<compile_context>
chip_gen: v5e
topology: v5e:2x2
jax: 0.10.0
libtpu: 0.0.40
codegen_flags: <defaults>
</compile_context>

<pallas_src>
import functools

import jax
import jax.numpy as jnp
from jax import lax
from jax.experimental import pallas as pl
from jax.experimental.pallas import tpu as pltpu

KSIZE = 7
PAD = KSIZE // 2
LANE = 128


def _spatial_attention_kernel(w_ref, m_ref, x_ref, o_ref, *, C, W, HWp):
    # w_ref : SMEM (2*49,) f32      flattened OIHW conv weight (out=1, in=2, 7, 7)
    # m_ref : VMEM (49, HWp) f32    precomputed combined row/col border masks
    # x_ref : VMEM (C, B_blk, HWp)  native-dtype input block, batch on sublanes
    # o_ref : VMEM (B_blk, HWp)     output block (pre-reshape of (B, 1, H, W))
    x = x_ref[...].astype(jnp.float32)                  # (C, B_blk, HWp)

    # Channel pooling: reduce over the leading (untiled) axis -> full-tile VPU ops.
    max_map = jnp.max(x, axis=0)                        # (B_blk, HWp)
    avg_map = jnp.sum(x, axis=0) * (1.0 / C)            # reciprocal folded at trace time

    # 7x7 zero-padded conv over the 2 pooled maps = 49 taps.  Both channel weights
    # are folded before the single lane roll; the border mask is a precomputed f32
    # table, so each tap is 5 VPU ops + 1 XLU roll on (B_blk, HWp) tiles.
    acc = jnp.zeros(max_map.shape, jnp.float32)
    for i in range(KSIZE):                              # row offset di = i - PAD
        for j in range(KSIZE):                          # col offset dj = j - PAD
            t = i * KSIZE + j
            wm = w_ref[t]                               # weight, max-pool channel
            wa = w_ref[KSIZE * KSIZE + t]               # weight, avg-pool channel
            tap = wm * max_map + wa * avg_map           # (B_blk, HWp), VPU
            s = (i - PAD) * W + (j - PAD)               # flat source offset
            if s != 0:
                tap = pltpu.roll(tap, shift=(-s) % HWp, axis=1)   # XLU lane rotate
            acc = acc + m_ref[t:t + 1, :] * tap         # masked accumulate

    o_ref[...] = jax.nn.sigmoid(acc).astype(o_ref.dtype)


def _pick_batch_block(N, C, HWp, itemsize):
    """Largest batch block whose double-buffered in+out working set fits a
    conservative VMEM budget.  Single grid step when everything fits (no forced
    split for megacore -- tiny steps are overhead-dominated); otherwise prefer
    divisors of N that are multiples of 8 (full sublane fill)."""
    budget_bytes = 12 << 20                     # safe under every chip's default scoped VMEM
    per_b = 2 * (C * HWp * itemsize + HWp * 4)  # in + out blocks, double-buffered
    max_b = max(1, budget_bytes // per_b)
    if N <= max_b:
        return N
    best, best8 = 1, None
    for b in range(1, min(N, max_b) + 1):
        if N % b == 0:
            best = b
            if b % 8 == 0:
                best8 = b
    return best8 if best8 is not None else best


@jax.jit
def channel_spatial_attention(x, conv_weight):
    """x: (N, C, H, W); conv_weight: (1, 2, 7, 7) (Conv2d(2, 1, 7, padding=3, bias=False)).
    Returns sigmoid(conv([max_c(x); mean_c(x)])) with shape (N, 1, H, W)."""
    N, C, H, W = x.shape
    HW = H * W
    HWp = ((HW + LANE - 1) // LANE) * LANE

    # Batch on sublanes: (C, N, HW).  No dtype up-cast here (cast per-block in-kernel).
    x_t = jnp.transpose(x.reshape(N, C, HW), (1, 0, 2))
    if HWp != HW:  # only pad when HW is not lane-dense (not hit for the tested shapes)
        x_t = jnp.pad(x_t, ((0, 0), (0, 0), (0, HWp - HW)))

    w_flat = conv_weight.reshape(-1).astype(jnp.float32)      # (2*49,), OIHW order

    # Precomputed (49, HWp) f32 border-validity masks for the zero-padded 7x7 conv.
    pos = jnp.arange(HWp, dtype=jnp.int32)
    row = pos // W
    col = pos % W
    masks = []
    for i in range(KSIZE):
        di = i - PAD
        rok = jnp.logical_and(row + di >= 0, row + di < H)
        for j in range(KSIZE):
            dj = j - PAD
            cok = jnp.logical_and(col + dj >= 0, col + dj < W)
            masks.append(jnp.logical_and(rok, cok))
    mask_tbl = jnp.stack(masks).astype(jnp.float32)           # (49, HWp)

    B_blk = _pick_batch_block(N, C, HWp, x.dtype.itemsize)
    grid = (N // B_blk,)

    kernel = functools.partial(_spatial_attention_kernel, C=C, W=W, HWp=HWp)

    out = pl.pallas_call(
        kernel,
        out_shape=jax.ShapeDtypeStruct((N, HWp), x.dtype),
        grid_spec=pltpu.PrefetchScalarGridSpec(
            num_scalar_prefetch=0,
            grid=grid,
            in_specs=[
                pl.BlockSpec(memory_space=pltpu.MemorySpace.SMEM),            # conv weights
                pl.BlockSpec((KSIZE * KSIZE, HWp), lambda n: (0, 0)),         # border masks
                pl.BlockSpec((C, B_blk, HWp), lambda n: (0, n, 0)),           # x block
            ],
            out_specs=pl.BlockSpec((B_blk, HWp), lambda n: (n, 0)),
        ),
        compiler_params=pltpu.CompilerParams(
            dimension_semantics=("parallel",),
            vmem_limit_bytes=32 * 1024 * 1024),
    )(w_flat, mask_tbl, x_t)

    return out[:, :HW].reshape(N, 1, H, W)


def reference(x, conv_weight):
    """Plain-JAX reference mirroring the PyTorch forward."""
    max_pool = jnp.max(x, axis=1, keepdims=True)
    avg_pool = jnp.mean(x, axis=1, keepdims=True)
    cat = jnp.concatenate([max_pool, avg_pool], axis=1)       # (N, 2, H, W)
    out = lax.conv_general_dilated(
        cat, conv_weight,
        window_strides=(1, 1),
        padding=((PAD, PAD), (PAD, PAD)),
        dimension_numbers=("NCHW", "OIHW", "NCHW"))
    return jax.nn.sigmoid(out)


if __name__ == "__main__":
    key = jax.random.PRNGKey(0)
    kx, kw = jax.random.split(key)

    N, C, H, W = 2, 4, 16, 16
    x = jax.random.normal(kx, (N, C, H, W), dtype=jnp.float32)
    # deterministic init for Conv2d(2, 1, 7, bias=False): shape (1, 2, 7, 7)
    conv_weight = (jax.random.uniform(kw, (1, 2, KSIZE, KSIZE), jnp.float32)
                   - 0.5) * 0.2

    out = jax.block_until_ready(channel_spatial_attention(x, conv_weight))
    ref = jax.block_until_ready(reference(x, conv_weight))

    assert out.shape == (N, 1, H, W), out.shape
    assert jnp.allclose(out, ref, atol=1e-5, rtol=1e-5), (
        float(jnp.max(jnp.abs(out - ref))))

    print("KERNEL_OK")
</pallas_src>

<mosaic_0001>
module attributes {stable_mosaic.version = 11 : i64} {
  func.func @_spatial_attention_kernel(%arg0: i32, %arg1: memref<98xf32, #tpu.memory_space<smem>>, %arg2: memref<49x256xf32, #tpu.memory_space<vmem>>, %arg3: memref<4x2x256xf32, #tpu.memory_space<vmem>>, %arg4: memref<2x256xf32, #tpu.memory_space<vmem>>) attributes {dimension_semantics = [#tpu.dimension_semantics<parallel>], iteration_bounds = array<i64: 1>, scalar_prefetch = 0 : i64, scratch_operands = 0 : i64, tpu.core_type = #tpu.core_type<tc>, window_params = [{transform_indices = @transform_0, window_bounds = array<i64: 98>}, {pipeline_mode = #tpu.pipeline_mode<synchronous>, transform_indices = @transform_1, window_bounds = array<i64: 49, 256>}, {transform_indices = @transform_2, window_bounds = array<i64: 4, 2, 256>}, {transform_indices = @transform_3, window_bounds = array<i64: 2, 256>}]} {
    %c0 = arith.constant 0 : index
    %c0_0 = arith.constant 0 : index
    %c0_1 = arith.constant 0 : index
    %0 = vector.load %arg3[%c0, %c0_0, %c0_1] : memref<4x2x256xf32, #tpu.memory_space<vmem>>, vector<4x2x256xf32>
    %cst = arith.constant dense<0xFF800000> : vector<2x256xf32>
    %1 = vector.multi_reduction <maximumf>, %0, %cst [0] : vector<4x2x256xf32> to vector<2x256xf32>
    %cst_2 = arith.constant dense<0.000000e+00> : vector<2x256xf32>
    %2 = vector.multi_reduction <add>, %0, %cst_2 [0] : vector<4x2x256xf32> to vector<2x256xf32>
    %cst_3 = arith.constant 2.500000e-01 : f32
    %3 = vector.broadcast %cst_3 : f32 to vector<2x256xf32>
    %4 = arith.mulf %2, %3 : vector<2x256xf32>
    %cst_4 = arith.constant 0.000000e+00 : f32
    %5 = vector.broadcast %cst_4 : f32 to vector<2x256xf32>
    %c0_5 = arith.constant 0 : index
    %6 = memref.load %arg1[%c0_5] : memref<98xf32, #tpu.memory_space<smem>>
    %c49 = arith.constant 49 : index
    %7 = memref.load %arg1[%c49] : memref<98xf32, #tpu.memory_space<smem>>
    %8 = vector.broadcast %6 : f32 to vector<2x256xf32>
    %9 = arith.mulf %8, %1 : vector<2x256xf32>
    %10 = vector.broadcast %7 : f32 to vector<2x256xf32>
    %11 = arith.mulf %10, %4 : vector<2x256xf32>
    %12 = arith.addf %9, %11 : vector<2x256xf32>
    %c51_i32 = arith.constant 51 : i32
    %13 = tpu.dynamic_rotate %12 by %c51_i32 dim 1 : vector<2x256xf32>, i32 -> vector<2x256xf32>
    %c0_6 = arith.constant 0 : index
    %c0_7 = arith.constant 0 : index
    %14 = vector.load %arg2[%c0_6, %c0_7] : memref<49x256xf32, #tpu.memory_space<vmem>>, vector<1x256xf32>
    %15 = vector.broadcast %14 : vector<1x256xf32> to vector<2x256xf32>
    %16 = arith.mulf %15, %13 : vector<2x256xf32>
    %17 = arith.addf %5, %16 : vector<2x256xf32>
    %c1 = arith.constant 1 : index
    %18 = memref.load %arg1[%c1] : memref<98xf32, #tpu.memory_space<smem>>
    %c50 = arith.constant 50 : index
    %19 = memref.load %arg1[%c50] : memref<98xf32, #tpu.memory_space<smem>>
    %20 = vector.broadcast %18 : f32 to vector<2x256xf32>
    %21 = arith.mulf %20, %1 : vector<2x256xf32>
    %22 = vector.broadcast %19 : f32 to vector<2x256xf32>
    %23 = arith.mulf %22, %4 : vector<2x256xf32>
    %24 = arith.addf %21, %23 : vector<2x256xf32>
    %c50_i32 = arith.constant 50 : i32
    %25 = tpu.dynamic_rotate %24 by %c50_i32 dim 1 : vector<2x256xf32>, i32 -> vector<2x256xf32>
    %c1_8 = arith.constant 1 : index
    %c0_9 = arith.constant 0 : index
    %26 = vector.load %arg2[%c1_8, %c0_9] : memref<49x256xf32, #tpu.memory_space<vmem>>, vector<1x256xf32>
    %27 = vector.broadcast %26 : vector<1x256xf32> to vector<2x256xf32>
    %28 = arith.mulf %27, %25 : vector<2x256xf32>
    %29 = arith.addf %17, %28 : vector<2x256xf32>
    %c2 = arith.constant 2 : index
    %30 = memref.load %arg1[%c2] : memref<98xf32, #tpu.memory_space<smem>>
    %c51 = arith.constant 51 : index
    %31 = memref.load %arg1[%c51] : memref<98xf32, #tpu.memory_space<smem>>
    %32 = vector.broadcast %30 : f32 to vector<2x256xf32>
    %33 = arith.mulf %32, %1 : vector<2x256xf32>
    %34 = vector.broadcast %31 : f32 to vector<2x256xf32>
    %35 = arith.mulf %34, %4 : vector<2x256xf32>
    %36 = arith.addf %33, %35 : vector<2x256xf32>
    %c49_i32 = arith.constant 49 : i32
    %37 = tpu.dynamic_rotate %36 by %c49_i32 dim 1 : vector<2x256xf32>, i32 -> vector<2x256xf32>
    %c2_10 = arith.constant 2 : index
    %c0_11 = arith.constant 0 : index
    %38 = vector.load %arg2[%c2_10, %c0_11] : memref<49x256xf32, #tpu.memory_space<vmem>>, vector<1x256xf32>
    %39 = vector.broadcast %38 : vector<1x256xf32> to vector<2x256xf32>
    %40 = arith.mulf %39, %37 : vector<2x256xf32>
    %41 = arith.addf %29, %40 : vector<2x256xf32>
    %c3 = arith.constant 3 : index
    %42 = memref.load %arg1[%c3] : memref<98xf32, #tpu.memory_space<smem>>
    %c52 = arith.constant 52 : index
    %43 = memref.load %arg1[%c52] : memref<98xf32, #tpu.memory_space<smem>>
    %44 = vector.broadcast %42 : f32 to vector<2x256xf32>
    %45 = arith.mulf %44, %1 : vector<2x256xf32>
    %46 = vector.broadcast %43 : f32 to vector<2x256xf32>
    %47 = arith.mulf %46, %4 : vector<2x256xf32>
    %48 = arith.addf %45, %47 : vector<2x256xf32>
    %c48_i32 = arith.constant 48 : i32
    %49 = tpu.dynamic_rotate %48 by %c48_i32 dim 1 : vector<2x256xf32>, i32 -> vector<2x256xf32>
    %c3_12 = arith.constant 3 : index
    %c0_13 = arith.constant 0 : index
    %50 = vector.load %arg2[%c3_12, %c0_13] : memref<49x256xf32, #tpu.memory_space<vmem>>, vector<1x256xf32>
    %51 = vector.broadcast %50 : vector<1x256xf32> to vector<2x256xf32>
    %52 = arith.mulf %51, %49 : vector<2x256xf32>
    %53 = arith.addf %41, %52 : vector<2x256xf32>
    %c4 = arith.constant 4 : index
    %54 = memref.load %arg1[%c4] : memref<98xf32, #tpu.memory_space<smem>>
    %c53 = arith.constant 53 : index
    %55 = memref.load %arg1[%c53] : memref<98xf32, #tpu.memory_space<smem>>
    %56 = vector.broadcast %54 : f32 to vector<2x256xf32>
    %57 = arith.mulf %56, %1 : vector<2x256xf32>
    %58 = vector.broadcast %55 : f32 to vector<2x256xf32>
    %59 = arith.mulf %58, %4 : vector<2x256xf32>
    %60 = arith.addf %57, %59 : vector<2x256xf32>
    %c47_i32 = arith.constant 47 : i32
    %61 = tpu.dynamic_rotate %60 by %c47_i32 dim 1 : vector<2x256xf32>, i32 -> vector<2x256xf32>
    %c4_14 = arith.constant 4 : index
    %c0_15 = arith.constant 0 : index
    %62 = vector.load %arg2[%c4_14, %c0_15] : memref<49x256xf32, #tpu.memory_space<vmem>>, vector<1x256xf32>
    %63 = vector.broadcast %62 : vector<1x256xf32> to vector<2x256xf32>
    %64 = arith.mulf %63, %61 : vector<2x256xf32>
    %65 = arith.addf %53, %64 : vector<2x256xf32>
    %c5 = arith.constant 5 : index
    %66 = memref.load %arg1[%c5] : memref<98xf32, #tpu.memory_space<smem>>
    %c54 = arith.constant 54 : index
    %67 = memref.load %arg1[%c54] : memref<98xf32, #tpu.memory_space<smem>>
    %68 = vector.broadcast %66 : f32 to vector<2x256xf32>
    %69 = arith.mulf %68, %1 : vector<2x256xf32>
    %70 = vector.broadcast %67 : f32 to vector<2x256xf32>
    %71 = arith.mulf %70, %4 : vector<2x256xf32>
    %72 = arith.addf %69, %71 : vector<2x256xf32>
    %c46_i32 = arith.constant 46 : i32
    %73 = tpu.dynamic_rotate %72 by %c46_i32 dim 1 : vector<2x256xf32>, i32 -> vector<2x256xf32>
    %c5_16 = arith.constant 5 : index
    %c0_17 = arith.constant 0 : index
    %74 = vector.load %arg2[%c5_16, %c0_17] : memref<49x256xf32, #tpu.memory_space<vmem>>, vector<1x256xf32>
    %75 = vector.broadcast %74 : vector<1x256xf32> to vector<2x256xf32>
    %76 = arith.mulf %75, %73 : vector<2x256xf32>
    %77 = arith.addf %65, %76 : vector<2x256xf32>
    %c6 = arith.constant 6 : index
    %78 = memref.load %arg1[%c6] : memref<98xf32, #tpu.memory_space<smem>>
    %c55 = arith.constant 55 : index
    %79 = memref.load %arg1[%c55] : memref<98xf32, #tpu.memory_space<smem>>
    %80 = vector.broadcast %78 : f32 to vector<2x256xf32>
    %81 = arith.mulf %80, %1 : vector<2x256xf32>
    %82 = vector.broadcast %79 : f32 to vector<2x256xf32>
    %83 = arith.mulf %82, %4 : vector<2x256xf32>
    %84 = arith.addf %81, %83 : vector<2x256xf32>
    %c45_i32 = arith.constant 45 : i32
    %85 = tpu.dynamic_rotate %84 by %c45_i32 dim 1 : vector<2x256xf32>, i32 -> vector<2x256xf32>
    %c6_18 = arith.constant 6 : index
    %c0_19 = arith.constant 0 : index
    %86 = vector.load %arg2[%c6_18, %c0_19] : memref<49x256xf32, #tpu.memory_space<vmem>>, vector<1x256xf32>
    %87 = vector.broadcast %86 : vector<1x256xf32> to vector<2x256xf32>
    %88 = arith.mulf %87, %85 : vector<2x256xf32>
    %89 = arith.addf %77, %88 : vector<2x256xf32>
    %c7 = arith.constant 7 : index
    %90 = memref.load %arg1[%c7] : memref<98xf32, #tpu.memory_space<smem>>
    %c56 = arith.constant 56 : index
    %91 = memref.load %arg1[%c56] : memref<98xf32, #tpu.memory_space<smem>>
    %92 = vector.broadcast %90 : f32 to vector<2x256xf32>
    %93 = arith.mulf %92, %1 : vector<2x256xf32>
    %94 = vector.broadcast %91 : f32 to vector<2x256xf32>
    %95 = arith.mulf %94, %4 : vector<2x256xf32>
    %96 = arith.addf %93, %95 : vector<2x256xf32>
    %c35_i32 = arith.constant 35 : i32
    %97 = tpu.dynamic_rotate %96 by %c35_i32 dim 1 : vector<2x256xf32>, i32 -> vector<2x256xf32>
    %c7_20 = arith.constant 7 : index
    %c0_21 = arith.constant 0 : index
    %98 = vector.load %arg2[%c7_20, %c0_21] : memref<49x256xf32, #tpu.memory_space<vmem>>, vector<1x256xf32>
    %99 = vector.broadcast %98 : vector<1x256xf32> to vector<2x256xf32>
    %100 = arith.mulf %99, %97 : vector<2x256xf32>
    %101 = arith.addf %89, %100 : vector<2x256xf32>
    %c8 = arith.constant 8 : index
    %102 = memref.load %arg1[%c8] : memref<98xf32, #tpu.memory_space<smem>>
    %c57 = arith.constant 57 : index
    %103 = memref.load %arg1[%c57] : memref<98xf32, #tpu.memory_space<smem>>
    %104 = vector.broadcast %102 : f32 to vector<2x256xf32>
    %105 = arith.mulf %104, %1 : vector<2x256xf32>
    %106 = vector.broadcast %103 : f32 to vector<2x256xf32>
    %107 = arith.mulf %106, %4 : vector<2x256xf32>
    %108 = arith.addf %105, %107 : vector<2x256xf32>
    %c34_i32 = arith.constant 34 : i32
    %109 = tpu.dynamic_rotate %108 by %c34_i32 dim 1 : vector<2x256xf32>, i32 -> vector<2x256xf32>
    %c8_22 = arith.constant 8 : index
    %c0_23 = arith.constant 0 : index
    %110 = vector.load %arg2[%c8_22, %c0_23] : memref<49x256xf32, #tpu.memory_space<vmem>>, vector<1x256xf32>
    %111 = vector.broadcast %110 : vector<1x256xf32> to vector<2x256xf32>
    %112 = arith.mulf %111, %109 : vector<2x256xf32>
    %113 = arith.addf %101, %112 : vector<2x256xf32>
    %c9 = arith.constant 9 : index
    %114 = memref.load %arg1[%c9] : memref<98xf32, #tpu.memory_space<smem>>
    %c58 = arith.constant 58 : index
    %115 = memref.load %arg1[%c58] : memref<98xf32, #tpu.memory_space<smem>>
    %116 = vector.broadcast %114 : f32 to vector<2x256xf32>
    %117 = arith.mulf %116, %1 : vector<2x256xf32>
    %118 = vector.broadcast %115 : f32 to vector<2x256xf32>
    %119 = arith.mulf %118, %4 : vector<2x256xf32>
    %120 = arith.addf %117, %119 : vector<2x256xf32>
    %c33_i32 = arith.constant 33 : i32
    %121 = tpu.dynamic_rotate %120 by %c33_i32 dim 1 : vector<2x256xf32>, i32 -> vector<2x256xf32>
    %c9_24 = arith.constant 9 : index
    %c0_25 = arith.constant 0 : index
    %122 = vector.load %arg2[%c9_24, %c0_25] : memref<49x256xf32, #tpu.memory_space<vmem>>, vector<1x256xf32>
    %123 = vector.broadcast %122 : vector<1x256xf32> to vector<2x256xf32>
    %124 = arith.mulf %123, %121 : vector<2x256xf32>
    %125 = arith.addf %113, %124 : vector<2x256xf32>
    %c10 = arith.constant 10 : index
    %126 = memref.load %arg1[%c10] : memref<98xf32, #tpu.memory_space<smem>>
    %c59 = arith.constant 59 : index
    %127 = memref.load %arg1[%c59] : memref<98xf32, #tpu.memory_space<smem>>
    %128 = vector.broadcast %126 : f32 to vector<2x256xf32>
    %129 = arith.mulf %128, %1 : vector<2x256xf32>
    %130 = vector.broadcast %127 : f32 to vector<2x256xf32>
    %131 = arith.mulf %130, %4 : vector<2x256xf32>
    %132 = arith.addf %129, %131 : vector<2x256xf32>
    %c32_i32 = arith.constant 32 : i32
    %133 = tpu.dynamic_rotate %132 by %c32_i32 dim 1 : vector<2x256xf32>, i32 -> vector<2x256xf32>
    %c10_26 = arith.constant 10 : index
    %c0_27 = arith.constant 0 : index
    %134 = vector.load %arg2[%c10_26, %c0_27] : memref<49x256xf32, #tpu.memory_space<vmem>>, vector<1x256xf32>
    %135 = vector.broadcast %134 : vector<1x256xf32> to vector<2x256xf32>
    %136 = arith.mulf %135, %133 : vector<2x256xf32>
    %137 = arith.addf %125, %136 : vector<2x256xf32>
    %c11 = arith.constant 11 : index
    %138 = memref.load %arg1[%c11] : memref<98xf32, #tpu.memory_space<smem>>
    %c60 = arith.constant 60 : index
    %139 = memref.load %arg1[%c60] : memref<98xf32, #tpu.memory_space<smem>>
    %140 = vector.broadcast %138 : f32 to vector<2x256xf32>
    %141 = arith.mulf %140, %1 : vector<2x256xf32>
    %142 = vector.broadcast %139 : f32 to vector<2x256xf32>
    %143 = arith.mulf %142, %4 : vector<2x256xf32>
    %144 = arith.addf %141, %143 : vector<2x256xf32>
    %c31_i32 = arith.constant 31 : i32
    %145 = tpu.dynamic_rotate %144 by %c31_i32 dim 1 : vector<2x256xf32>, i32 -> vector<2x256xf32>
    %c11_28 = arith.constant 11 : index
    %c0_29 = arith.constant 0 : index
    %146 = vector.load %arg2[%c11_28, %c0_29] : memref<49x256xf32, #tpu.memory_space<vmem>>, vector<1x256xf32>
    %147 = vector.broadcast %146 : vector<1x256xf32> to vector<2x256xf32>
    %148 = arith.mulf %147, %145 : vector<2x256xf32>
    %149 = arith.addf %137, %148 : vector<2x256xf32>
    %c12 = arith.constant 12 : index
    %150 = memref.load %arg1[%c12] : memref<98xf32, #tpu.memory_space<smem>>
    %c61 = arith.constant 61 : index
    %151 = memref.load %arg1[%c61] : memref<98xf32, #tpu.memory_space<smem>>
    %152 = vector.broadcast %150 : f32 to vector<2x256xf32>
    %153 = arith.mulf %152, %1 : vector<2x256xf32>
    %154 = vector.broadcast %151 : f32 to vector<2x256xf32>
    %155 = arith.mulf %154, %4 : vector<2x256xf32>
    %156 = arith.addf %153, %155 : vector<2x256xf32>
    %c30_i32 = arith.constant 30 : i32
    %157 = tpu.dynamic_rotate %156 by %c30_i32 dim 1 : vector<2x256xf32>, i32 -> vector<2x256xf32>
    %c12_30 = arith.constant 12 : index
    %c0_31 = arith.constant 0 : index
    %158 = vector.load %arg2[%c12_30, %c0_31] : memref<49x256xf32, #tpu.memory_space<vmem>>, vector<1x256xf32>
    %159 = vector.broadcast %158 : vector<1x256xf32> to vector<2x256xf32>
    %160 = arith.mulf %159, %157 : vector<2x256xf32>
    %161 = arith.addf %149, %160 : vector<2x256xf32>
    %c13 = arith.constant 13 : index
    %162 = memref.load %arg1[%c13] : memref<98xf32, #tpu.memory_space<smem>>
    %c62 = arith.constant 62 : index
    %163 = memref.load %arg1[%c62] : memref<98xf32, #tpu.memory_space<smem>>
    %164 = vector.broadcast %162 : f32 to vector<2x256xf32>
    %165 = arith.mulf %164, %1 : vector<2x256xf32>
    %166 = vector.broadcast %163 : f32 to vector<2x256xf32>
    %167 = arith.mulf %166, %4 : vector<2x256xf32>
    %168 = arith.addf %165, %167 : vector<2x256xf32>
    %c29_i32 = arith.constant 29 : i32
    %169 = tpu.dynamic_rotate %168 by %c29_i32 dim 1 : vector<2x256xf32>, i32 -> vector<2x256xf32>
    %c13_32 = arith.constant 13 : index
    %c0_33 = arith.constant 0 : index
    %170 = vector.load %arg2[%c13_32, %c0_33] : memref<49x256xf32, #tpu.memory_space<vmem>>, vector<1x256xf32>
    %171 = vector.broadcast %170 : vector<1x256xf32> to vector<2x256xf32>
    %172 = arith.mulf %171, %169 : vector<2x256xf32>
    %173 = arith.addf %161, %172 : vector<2x256xf32>
    %c14 = arith.constant 14 : index
    %174 = memref.load %arg1[%c14] : memref<98xf32, #tpu.memory_space<smem>>
    %c63 = arith.constant 63 : index
    %175 = memref.load %arg1[%c63] : memref<98xf32, #tpu.memory_space<smem>>
    %176 = vector.broadcast %174 : f32 to vector<2x256xf32>
    %177 = arith.mulf %176, %1 : vector<2x256xf32>
    %178 = vector.broadcast %175 : f32 to vector<2x256xf32>
    %179 = arith.mulf %178, %4 : vector<2x256xf32>
    %180 = arith.addf %177, %179 : vector<2x256xf32>
    %c19_i32 = arith.constant 19 : i32
    %181 = tpu.dynamic_rotate %180 by %c19_i32 dim 1 : vector<2x256xf32>, i32 -> vector<2x256xf32>
    %c14_34 = arith.constant 14 : index
    %c0_35 = arith.constant 0 : index
    %182 = vector.load %arg2[%c14_34, %c0_35] : memref<49x256xf32, #tpu.memory_space<vmem>>, vector<1x256xf32>
    %183 = vector.broadcast %182 : vector<1x256xf32> to vector<2x256xf32>
    %184 = arith.mulf %183, %181 : vector<2x256xf32>
    %185 = arith.addf %173, %184 : vector<2x256xf32>
    %c15 = arith.constant 15 : index
    %186 = memref.load %arg1[%c15] : memref<98xf32, #tpu.memory_space<smem>>
    %c64 = arith.constant 64 : index
    %187 = memref.load %arg1[%c64] : memref<98xf32, #tpu.memory_space<smem>>
    %188 = vector.broadcast %186 : f32 to vector<2x256xf32>
    %189 = arith.mulf %188, %1 : vector<2x256xf32>
    %190 = vector.broadcast %187 : f32 to vector<2x256xf32>
    %191 = arith.mulf %190, %4 : vector<2x256xf32>
    %192 = arith.addf %189, %191 : vector<2x256xf32>
    %c18_i32 = arith.constant 18 : i32
    %193 = tpu.dynamic_rotate %192 by %c18_i32 dim 1 : vector<2x256xf32>, i32 -> vector<2x256xf32>
    %c15_36 = arith.constant 15 : index
    %c0_37 = arith.constant 0 : index
    %194 = vector.load %arg2[%c15_36, %c0_37] : memref<49x256xf32, #tpu.memory_space<vmem>>, vector<1x256xf32>
    %195 = vector.broadcast %194 : vector<1x256xf32> to vector<2x256xf32>
    %196 = arith.mulf %195, %193 : vector<2x256xf32>
    %197 = arith.addf %185, %196 : vector<2x256xf32>
    %c16 = arith.constant 16 : index
    %198 = memref.load %arg1[%c16] : memref<98xf32, #tpu.memory_space<smem>>
    %c65 = arith.constant 65 : index
    %199 = memref.load %arg1[%c65] : memref<98xf32, #tpu.memory_space<smem>>
    %200 = vector.broadcast %198 : f32 to vector<2x256xf32>
    %201 = arith.mulf %200, %1 : vector<2x256xf32>
    %202 = vector.broadcast %199 : f32 to vector<2x256xf32>
    %203 = arith.mulf %202, %4 : vector<2x256xf32>
    %204 = arith.addf %201, %203 : vector<2x256xf32>
    %c17_i32 = arith.constant 17 : i32
    %205 = tpu.dynamic_rotate %204 by %c17_i32 dim 1 : vector<2x256xf32>, i32 -> vector<2x256xf32>
    %c16_38 = arith.constant 16 : index
    %c0_39 = arith.constant 0 : index
    %206 = vector.load %arg2[%c16_38, %c0_39] : memref<49x256xf32, #tpu.memory_space<vmem>>, vector<1x256xf32>
    %207 = vector.broadcast %206 : vector<1x256xf32> to vector<2x256xf32>
    %208 = arith.mulf %207, %205 : vector<2x256xf32>
    %209 = arith.addf %197, %208 : vector<2x256xf32>
    %c17 = arith.constant 17 : index
    %210 = memref.load %arg1[%c17] : memref<98xf32, #tpu.memory_space<smem>>
    %c66 = arith.constant 66 : index
    %211 = memref.load %arg1[%c66] : memref<98xf32, #tpu.memory_space<smem>>
    %212 = vector.broadcast %210 : f32 to vector<2x256xf32>
    %213 = arith.mulf %212, %1 : vector<2x256xf32>
    %214 = vector.broadcast %211 : f32 to vector<2x256xf32>
    %215 = arith.mulf %214, %4 : vector<2x256xf32>
    %216 = arith.addf %213, %215 : vector<2x256xf32>
    %c16_i32 = arith.constant 16 : i32
    %217 = tpu.dynamic_rotate %216 by %c16_i32 dim 1 : vector<2x256xf32>, i32 -> vector<2x256xf32>
    %c17_40 = arith.constant 17 : index
    %c0_41 = arith.constant 0 : index
    %218 = vector.load %arg2[%c17_40, %c0_41] : memref<49x256xf32, #tpu.memory_space<vmem>>, vector<1x256xf32>
    %219 = vector.broadcast %218 : vector<1x256xf32> to vector<2x256xf32>
    %220 = arith.mulf %219, %217 : vector<2x256xf32>
    %221 = arith.addf %209, %220 : vector<2x256xf32>
    %c18 = arith.constant 18 : index
    %222 = memref.load %arg1[%c18] : memref<98xf32, #tpu.memory_space<smem>>
    %c67 = arith.constant 67 : index
    %223 = memref.load %arg1[%c67] : memref<98xf32, #tpu.memory_space<smem>>
    %224 = vector.broadcast %222 : f32 to vector<2x256xf32>
    %225 = arith.mulf %224, %1 : vector<2x256xf32>
    %226 = vector.broadcast %223 : f32 to vector<2x256xf32>
    %227 = arith.mulf %226, %4 : vector<2x256xf32>
    %228 = arith.addf %225, %227 : vector<2x256xf32>
    %c15_i32 = arith.constant 15 : i32
    %229 = tpu.dynamic_rotate %228 by %c15_i32 dim 1 : vector<2x256xf32>, i32 -> vector<2x256xf32>
    %c18_42 = arith.constant 18 : index
    %c0_43 = arith.constant 0 : index
    %230 = vector.load %arg2[%c18_42, %c0_43] : memref<49x256xf32, #tpu.memory_space<vmem>>, vector<1x256xf32>
    %231 = vector.broadcast %230 : vector<1x256xf32> to vector<2x256xf32>
    %232 = arith.mulf %231, %229 : vector<2x256xf32>
    %233 = arith.addf %221, %232 : vector<2x256xf32>
    %c19 = arith.constant 19 : index
    %234 = memref.load %arg1[%c19] : memref<98xf32, #tpu.memory_space<smem>>
    %c68 = arith.constant 68 : index
    %235 = memref.load %arg1[%c68] : memref<98xf32, #tpu.memory_space<smem>>
    %236 = vector.broadcast %234 : f32 to vector<2x256xf32>
    %237 = arith.mulf %236, %1 : vector<2x256xf32>
    %238 = vector.broadcast %235 : f32 to vector<2x256xf32>
    %239 = arith.mulf %238, %4 : vector<2x256xf32>
    %240 = arith.addf %237, %239 : vector<2x256xf32>
    %c14_i32 = arith.constant 14 : i32
    %241 = tpu.dynamic_rotate %240 by %c14_i32 dim 1 : vector<2x256xf32>, i32 -> vector<2x256xf32>
    %c19_44 = arith.constant 19 : index
    %c0_45 = arith.constant 0 : index
    %242 = vector.load %arg2[%c19_44, %c0_45] : memref<49x256xf32, #tpu.memory_space<vmem>>, vector<1x256xf32>
    %243 = vector.broadcast %242 : vector<1x256xf32> to vector<2x256xf32>
    %244 = arith.mulf %243, %241 : vector<2x256xf32>
    %245 = arith.addf %233, %244 : vector<2x256xf32>
    %c20 = arith.constant 20 : index
    %246 = memref.load %arg1[%c20] : memref<98xf32, #tpu.memory_space<smem>>
    %c69 = arith.constant 69 : index
    %247 = memref.load %arg1[%c69] : memref<98xf32, #tpu.memory_space<smem>>
    %248 = vector.broadcast %246 : f32 to vector<2x256xf32>
    %249 = arith.mulf %248, %1 : vector<2x256xf32>
    %250 = vector.broadcast %247 : f32 to vector<2x256xf32>
    %251 = arith.mulf %250, %4 : vector<2x256xf32>
    %252 = arith.addf %249, %251 : vector<2x256xf32>
    %c13_i32 = arith.constant 13 : i32
    %253 = tpu.dynamic_rotate %252 by %c13_i32 dim 1 : vector<2x256xf32>, i32 -> vector<2x256xf32>
    %c20_46 = arith.constant 20 : index
    %c0_47 = arith.constant 0 : index
    %254 = vector.load %arg2[%c20_46, %c0_47] : memref<49x256xf32, #tpu.memory_space<vmem>>, vector<1x256xf32>
    %255 = vector.broadcast %254 : vector<1x256xf32> to vector<2x256xf32>
    %256 = arith.mulf %255, %253 : vector<2x256xf32>
    %257 = arith.addf %245, %256 : vector<2x256xf32>
    %c21 = arith.constant 21 : index
    %258 = memref.load %arg1[%c21] : memref<98xf32, #tpu.memory_space<smem>>
    %c70 = arith.constant 70 : index
    %259 = memref.load %arg1[%c70] : memref<98xf32, #tpu.memory_space<smem>>
    %260 = vector.broadcast %258 : f32 to vector<2x256xf32>
    %261 = arith.mulf %260, %1 : vector<2x256xf32>
    %262 = vector.broadcast %259 : f32 to vector<2x256xf32>
    %263 = arith.mulf %262, %4 : vector<2x256xf32>
    %264 = arith.addf %261, %263 : vector<2x256xf32>
    %c3_i32 = arith.constant 3 : i32
    %265 = tpu.dynamic_rotate %264 by %c3_i32 dim 1 : vector<2x256xf32>, i32 -> vector<2x256xf32>
    %c21_48 = arith.constant 21 : index
    %c0_49 = arith.constant 0 : index
    %266 = vector.load %arg2[%c21_48, %c0_49] : memref<49x256xf32, #tpu.memory_space<vmem>>, vector<1x256xf32>
    %267 = vector.broadcast %266 : vector<1x256xf32> to vector<2x256xf32>
    %268 = arith.mulf %267, %265 : vector<2x256xf32>
    %269 = arith.addf %257, %268 : vector<2x256xf32>
    %c22 = arith.constant 22 : index
    %270 = memref.load %arg1[%c22] : memref<98xf32, #tpu.memory_space<smem>>
    %c71 = arith.constant 71 : index
    %271 = memref.load %arg1[%c71] : memref<98xf32, #tpu.memory_space<smem>>
    %272 = vector.broadcast %270 : f32 to vector<2x256xf32>
    %273 = arith.mulf %272, %1 : vector<2x256xf32>
    %274 = vector.broadcast %271 : f32 to vector<2x256xf32>
    %275 = arith.mulf %274, %4 : vector<2x256xf32>
    %276 = arith.addf %273, %275 : vector<2x256xf32>
    %c2_i32 = arith.constant 2 : i32
    %277 = tpu.dynamic_rotate %276 by %c2_i32 dim 1 : vector<2x256xf32>, i32 -> vector<2x256xf32>
    %c22_50 = arith.constant 22 : index
    %c0_51 = arith.constant 0 : index
    %278 = vector.load %arg2[%c22_50, %c0_51] : memref<49x256xf32, #tpu.memory_space<vmem>>, vector<1x256xf32>
    %279 = vector.broadcast %278 : vector<1x256xf32> to vector<2x256xf32>
    %280 = arith.mulf %279, %277 : vector<2x256xf32>
    %281 = arith.addf %269, %280 : vector<2x256xf32>
    %c23 = arith.constant 23 : index
    %282 = memref.load %arg1[%c23] : memref<98xf32, #tpu.memory_space<smem>>
    %c72 = arith.constant 72 : index
    %283 = memref.load %arg1[%c72] : memref<98xf32, #tpu.memory_space<smem>>
    %284 = vector.broadcast %282 : f32 to vector<2x256xf32>
    %285 = arith.mulf %284, %1 : vector<2x256xf32>
    %286 = vector.broadcast %283 : f32 to vector<2x256xf32>
    %287 = arith.mulf %286, %4 : vector<2x256xf32>
    %288 = arith.addf %285, %287 : vector<2x256xf32>
    %c1_i32 = arith.constant 1 : i32
    %289 = tpu.dynamic_rotate %288 by %c1_i32 dim 1 : vector<2x256xf32>, i32 -> vector<2x256xf32>
    %c23_52 = arith.constant 23 : index
    %c0_53 = arith.constant 0 : index
    %290 = vector.load %arg2[%c23_52, %c0_53] : memref<49x256xf32, #tpu.memory_space<vmem>>, vector<1x256xf32>
    %291 = vector.broadcast %290 : vector<1x256xf32> to vector<2x256xf32>
    %292 = arith.mulf %291, %289 : vector<2x256xf32>
    %293 = arith.addf %281, %292 : vector<2x256xf32>
    %c24 = arith.constant 24 : index
    %294 = memref.load %arg1[%c24] : memref<98xf32, #tpu.memory_space<smem>>
    %c73 = arith.constant 73 : index
    %295 = memref.load %arg1[%c73] : memref<98xf32, #tpu.memory_space<smem>>
    %296 = vector.broadcast %294 : f32 to vector<2x256xf32>
    %297 = arith.mulf %296, %1 : vector<2x256xf32>
    %298 = vector.broadcast %295 : f32 to vector<2x256xf32>
    %299 = arith.mulf %298, %4 : vector<2x256xf32>
    %300 = arith.addf %297, %299 : vector<2x256xf32>
    %c24_54 = arith.constant 24 : index
    %c0_55 = arith.constant 0 : index
    %301 = vector.load %arg2[%c24_54, %c0_55] : memref<49x256xf32, #tpu.memory_space<vmem>>, vector<1x256xf32>
    %302 = vector.broadcast %301 : vector<1x256xf32> to vector<2x256xf32>
    %303 = arith.mulf %302, %300 : vector<2x256xf32>
    %304 = arith.addf %293, %303 : vector<2x256xf32>
    %c25 = arith.constant 25 : index
    %305 = memref.load %arg1[%c25] : memref<98xf32, #tpu.memory_space<smem>>
    %c74 = arith.constant 74 : index
    %306 = memref.load %arg1[%c74] : memref<98xf32, #tpu.memory_space<smem>>
    %307 = vector.broadcast %305 : f32 to vector<2x256xf32>
    %308 = arith.mulf %307, %1 : vector<2x256xf32>
    %309 = vector.broadcast %306 : f32 to vector<2x256xf32>
    %310 = arith.mulf %309, %4 : vector<2x256xf32>
    %311 = arith.addf %308, %310 : vector<2x256xf32>
    %c255_i32 = arith.constant 255 : i32
    %312 = tpu.dynamic_rotate %311 by %c255_i32 dim 1 : vector<2x256xf32>, i32 -> vector<2x256xf32>
    %c25_56 = arith.constant 25 : index
    %c0_57 = arith.constant 0 : index
    %313 = vector.load %arg2[%c25_56, %c0_57] : memref<49x256xf32, #tpu.memory_space<vmem>>, vector<1x256xf32>
    %314 = vector.broadcast %313 : vector<1x256xf32> to vector<2x256xf32>
    %315 = arith.mulf %314, %312 : vector<2x256xf32>
    %316 = arith.addf %304, %315 : vector<2x256xf32>
    %c26 = arith.constant 26 : index
    %317 = memref.load %arg1[%c26] : memref<98xf32, #tpu.memory_space<smem>>
    %c75 = arith.constant 75 : index
    %318 = memref.load %arg1[%c75] : memref<98xf32, #tpu.memory_space<smem>>
    %319 = vector.broadcast %317 : f32 to vector<2x256xf32>
    %320 = arith.mulf %319, %1 : vector<2x256xf32>
    %321 = vector.broadcast %318 : f32 to vector<2x256xf32>
    %322 = arith.mulf %321, %4 : vector<2x256xf32>
    %323 = arith.addf %320, %322 : vector<2x256xf32>
    %c254_i32 = arith.constant 254 : i32
    %324 = tpu.dynamic_rotate %323 by %c254_i32 dim 1 : vector<2x256xf32>, i32 -> vector<2x256xf32>
    %c26_58 = arith.constant 26 : index
    %c0_59 = arith.constant 0 : index
    %325 = vector.load %arg2[%c26_58, %c0_59] : memref<49x256xf32, #tpu.memory_space<vmem>>, vector<1x256xf32>
    %326 = vector.broadcast %325 : vector<1x256xf32> to vector<2x256xf32>
    %327 = arith.mulf %326, %324 : vector<2x256xf32>
    %328 = arith.addf %316, %327 : vector<2x256xf32>
    %c27 = arith.constant 27 : index
    %329 = memref.load %arg1[%c27] : memref<98xf32, #tpu.memory_space<smem>>
    %c76 = arith.constant 76 : index
    %330 = memref.load %arg1[%c76] : memref<98xf32, #tpu.memory_space<smem>>
    %331 = vector.broadcast %329 : f32 to vector<2x256xf32>
    %332 = arith.mulf %331, %1 : vector<2x256xf32>
    %333 = vector.broadcast %330 : f32 to vector<2x256xf32>
    %334 = arith.mulf %333, %4 : vector<2x256xf32>
    %335 = arith.addf %332, %334 : vector<2x256xf32>
    %c253_i32 = arith.constant 253 : i32
    %336 = tpu.dynamic_rotate %335 by %c253_i32 dim 1 : vector<2x256xf32>, i32 -> vector<2x256xf32>
    %c27_60 = arith.constant 27 : index
    %c0_61 = arith.constant 0 : index
    %337 = vector.load %arg2[%c27_60, %c0_61] : memref<49x256xf32, #tpu.memory_space<vmem>>, vector<1x256xf32>
    %338 = vector.broadcast %337 : vector<1x256xf32> to vector<2x256xf32>
    %339 = arith.mulf %338, %336 : vector<2x256xf32>
    %340 = arith.addf %328, %339 : vector<2x256xf32>
    %c28 = arith.constant 28 : index
    %341 = memref.load %arg1[%c28] : memref<98xf32, #tpu.memory_space<smem>>
    %c77 = arith.constant 77 : index
    %342 = memref.load %arg1[%c77] : memref<98xf32, #tpu.memory_space<smem>>
    %343 = vector.broadcast %341 : f32 to vector<2x256xf32>
    %344 = arith.mulf %343, %1 : vector<2x256xf32>
    %345 = vector.broadcast %342 : f32 to vector<2x256xf32>
    %346 = arith.mulf %345, %4 : vector<2x256xf32>
    %347 = arith.addf %344, %346 : vector<2x256xf32>
    %c243_i32 = arith.constant 243 : i32
    %348 = tpu.dynamic_rotate %347 by %c243_i32 dim 1 : vector<2x256xf32>, i32 -> vector<2x256xf32>
    %c28_62 = arith.constant 28 : index
    %c0_63 = arith.constant 0 : index
    %349 = vector.load %arg2[%c28_62, %c0_63] : memref<49x256xf32, #tpu.memory_space<vmem>>, vector<1x256xf32>
    %350 = vector.broadcast %349 : vector<1x256xf32> to vector<2x256xf32>
    %351 = arith.mulf %350, %348 : vector<2x256xf32>
    %352 = arith.addf %340, %351 : vector<2x256xf32>
    %c29 = arith.constant 29 : index
    %353 = memref.load %arg1[%c29] : memref<98xf32, #tpu.memory_space<smem>>
    %c78 = arith.constant 78 : index
    %354 = memref.load %arg1[%c78] : memref<98xf32, #tpu.memory_space<smem>>
    %355 = vector.broadcast %353 : f32 to vector<2x256xf32>
    %356 = arith.mulf %355, %1 : vector<2x256xf32>
    %357 = vector.broadcast %354 : f32 to vector<2x256xf32>
    %358 = arith.mulf %357, %4 : vector<2x256xf32>
    %359 = arith.addf %356, %358 : vector<2x256xf32>
    %c242_i32 = arith.constant 242 : i32
    %360 = tpu.dynamic_rotate %359 by %c242_i32 dim 1 : vector<2x256xf32>, i32 -> vector<2x256xf32>
    %c29_64 = arith.constant 29 : index
    %c0_65 = arith.constant 0 : index
    %361 = vector.load %arg2[%c29_64, %c0_65] : memref<49x256xf32, #tpu.memory_space<vmem>>, vector<1x256xf32>
    %362 = vector.broadcast %361 : vector<1x256xf32> to vector<2x256xf32>
    %363 = arith.mulf %362, %360 : vector<2x256xf32>
    %364 = arith.addf %352, %363 : vector<2x256xf32>
    %c30 = arith.constant 30 : index
    %365 = memref.load %arg1[%c30] : memref<98xf32, #tpu.memory_space<smem>>
    %c79 = arith.constant 79 : index
    %366 = memref.load %arg1[%c79] : memref<98xf32, #tpu.memory_space<smem>>
    %367 = vector.broadcast %365 : f32 to vector<2x256xf32>
    %368 = arith.mulf %367, %1 : vector<2x256xf32>
    %369 = vector.broadcast %366 : f32 to vector<2x256xf32>
    %370 = arith.mulf %369, %4 : vector<2x256xf32>
    %371 = arith.addf %368, %370 : vector<2x256xf32>
    %c241_i32 = arith.constant 241 : i32
    %372 = tpu.dynamic_rotate %371 by %c241_i32 dim 1 : vector<2x256xf32>, i32 -> vector<2x256xf32>
    %c30_66 = arith.constant 30 : index
    %c0_67 = arith.constant 0 : index
    %373 = vector.load %arg2[%c30_66, %c0_67] : memref<49x256xf32, #tpu.memory_space<vmem>>, vector<1x256xf32>
    %374 = vector.broadcast %373 : vector<1x256xf32> to vector<2x256xf32>
    %375 = arith.mulf %374, %372 : vector<2x256xf32>
    %376 = arith.addf %364, %375 : vector<2x256xf32>
    %c31 = arith.constant 31 : index
    %377 = memref.load %arg1[%c31] : memref<98xf32, #tpu.memory_space<smem>>
    %c80 = arith.constant 80 : index
    %378 = memref.load %arg1[%c80] : memref<98xf32, #tpu.memory_space<smem>>
    %379 = vector.broadcast %377 : f32 to vector<2x256xf32>
    %380 = arith.mulf %379, %1 : vector<2x256xf32>
    %381 = vector.broadcast %378 : f32 to vector<2x256xf32>
    %382 = arith.mulf %381, %4 : vector<2x256xf32>
    %383 = arith.addf %380, %382 : vector<2x256xf32>
    %c240_i32 = arith.constant 240 : i32
    %384 = tpu.dynamic_rotate %383 by %c240_i32 dim 1 : vector<2x256xf32>, i32 -> vector<2x256xf32>
    %c31_68 = arith.constant 31 : index
    %c0_69 = arith.constant 0 : index
    %385 = vector.load %arg2[%c31_68, %c0_69] : memref<49x256xf32, #tpu.memory_space<vmem>>, vector<1x256xf32>
    %386 = vector.broadcast %385 : vector<1x256xf32> to vector<2x256xf32>
    %387 = arith.mulf %386, %384 : vector<2x256xf32>
    %388 = arith.addf %376, %387 : vector<2x256xf32>
    %c32 = arith.constant 32 : index
    %389 = memref.load %arg1[%c32] : memref<98xf32, #tpu.memory_space<smem>>
    %c81 = arith.constant 81 : index
    %390 = memref.load %arg1[%c81] : memref<98xf32, #tpu.memory_space<smem>>
    %391 = vector.broadcast %389 : f32 to vector<2x256xf32>
    %392 = arith.mulf %391, %1 : vector<2x256xf32>
    %393 = vector.broadcast %390 : f32 to vector<2x256xf32>
    %394 = arith.mulf %393, %4 : vector<2x256xf32>
    %395 = arith.addf %392, %394 : vector<2x256xf32>
    %c239_i32 = arith.constant 239 : i32
    %396 = tpu.dynamic_rotate %395 by %c239_i32 dim 1 : vector<2x256xf32>, i32 -> vector<2x256xf32>
    %c32_70 = arith.constant 32 : index
    %c0_71 = arith.constant 0 : index
    %397 = vector.load %arg2[%c32_70, %c0_71] : memref<49x256xf32, #tpu.memory_space<vmem>>, vector<1x256xf32>
    %398 = vector.broadcast %397 : vector<1x256xf32> to vector<2x256xf32>
    %399 = arith.mulf %398, %396 : vector<2x256xf32>
    %400 = arith.addf %388, %399 : vector<2x256xf32>
    %c33 = arith.constant 33 : index
    %401 = memref.load %arg1[%c33] : memref<98xf32, #tpu.memory_space<smem>>
    %c82 = arith.constant 82 : index
    %402 = memref.load %arg1[%c82] : memref<98xf32, #tpu.memory_space<smem>>
    %403 = vector.broadcast %401 : f32 to vector<2x256xf32>
    %404 = arith.mulf %403, %1 : vector<2x256xf32>
    %405 = vector.broadcast %402 : f32 to vector<2x256xf32>
    %406 = arith.mulf %405, %4 : vector<2x256xf32>
    %407 = arith.addf %404, %406 : vector<2x256xf32>
    %c238_i32 = arith.constant 238 : i32
    %408 = tpu.dynamic_rotate %407 by %c238_i32 dim 1 : vector<2x256xf32>, i32 -> vector<2x256xf32>
    %c33_72 = arith.constant 33 : index
    %c0_73 = arith.constant 0 : index
    %409 = vector.load %arg2[%c33_72, %c0_73] : memref<49x256xf32, #tpu.memory_space<vmem>>, vector<1x256xf32>
    %410 = vector.broadcast %409 : vector<1x256xf32> to vector<2x256xf32>
    %411 = arith.mulf %410, %408 : vector<2x256xf32>
    %412 = arith.addf %400, %411 : vector<2x256xf32>
    %c34 = arith.constant 34 : index
    %413 = memref.load %arg1[%c34] : memref<98xf32, #tpu.memory_space<smem>>
    %c83 = arith.constant 83 : index
    %414 = memref.load %arg1[%c83] : memref<98xf32, #tpu.memory_space<smem>>
    %415 = vector.broadcast %413 : f32 to vector<2x256xf32>
    %416 = arith.mulf %415, %1 : vector<2x256xf32>
    %417 = vector.broadcast %414 : f32 to vector<2x256xf32>
    %418 = arith.mulf %417, %4 : vector<2x256xf32>
    %419 = arith.addf %416, %418 : vector<2x256xf32>
    %c237_i32 = arith.constant 237 : i32
    %420 = tpu.dynamic_rotate %419 by %c237_i32 dim 1 : vector<2x256xf32>, i32 -> vector<2x256xf32>
    %c34_74 = arith.constant 34 : index
    %c0_75 = arith.constant 0 : index
    %421 = vector.load %arg2[%c34_74, %c0_75] : memref<49x256xf32, #tpu.memory_space<vmem>>, vector<1x256xf32>
    %422 = vector.broadcast %421 : vector<1x256xf32> to vector<2x256xf32>
    %423 = arith.mulf %422, %420 : vector<2x256xf32>
    %424 = arith.addf %412, %423 : vector<2x256xf32>
    %c35 = arith.constant 35 : index
    %425 = memref.load %arg1[%c35] : memref<98xf32, #tpu.memory_space<smem>>
    %c84 = arith.constant 84 : index
    %426 = memref.load %arg1[%c84] : memref<98xf32, #tpu.memory_space<smem>>
    %427 = vector.broadcast %425 : f32 to vector<2x256xf32>
    %428 = arith.mulf %427, %1 : vector<2x256xf32>
    %429 = vector.broadcast %426 : f32 to vector<2x256xf32>
    %430 = arith.mulf %429, %4 : vector<2x256xf32>
    %431 = arith.addf %428, %430 : vector<2x256xf32>
    %c227_i32 = arith.constant 227 : i32
    %432 = tpu.dynamic_rotate %431 by %c227_i32 dim 1 : vector<2x256xf32>, i32 -> vector<2x256xf32>
    %c35_76 = arith.constant 35 : index
    %c0_77 = arith.constant 0 : index
    %433 = vector.load %arg2[%c35_76, %c0_77] : memref<49x256xf32, #tpu.memory_space<vmem>>, vector<1x256xf32>
    %434 = vector.broadcast %433 : vector<1x256xf32> to vector<2x256xf32>
    %435 = arith.mulf %434, %432 : vector<2x256xf32>
    %436 = arith.addf %424, %435 : vector<2x256xf32>
    %c36 = arith.constant 36 : index
    %437 = memref.load %arg1[%c36] : memref<98xf32, #tpu.memory_space<smem>>
    %c85 = arith.constant 85 : index
    %438 = memref.load %arg1[%c85] : memref<98xf32, #tpu.memory_space<smem>>
    %439 = vector.broadcast %437 : f32 to vector<2x256xf32>
    %440 = arith.mulf %439, %1 : vector<2x256xf32>
    %441 = vector.broadcast %438 : f32 to vector<2x256xf32>
    %442 = arith.mulf %441, %4 : vector<2x256xf32>
    %443 = arith.addf %440, %442 : vector<2x256xf32>
    %c226_i32 = arith.constant 226 : i32
    %444 = tpu.dynamic_rotate %443 by %c226_i32 dim 1 : vector<2x256xf32>, i32 -> vector<2x256xf32>
    %c36_78 = arith.constant 36 : index
    %c0_79 = arith.constant 0 : index
    %445 = vector.load %arg2[%c36_78, %c0_79] : memref<49x256xf32, #tpu.memory_space<vmem>>, vector<1x256xf32>
    %446 = vector.broadcast %445 : vector<1x256xf32> to vector<2x256xf32>
    %447 = arith.mulf %446, %444 : vector<2x256xf32>
    %448 = arith.addf %436, %447 : vector<2x256xf32>
    %c37 = arith.constant 37 : index
    %449 = memref.load %arg1[%c37] : memref<98xf32, #tpu.memory_space<smem>>
    %c86 = arith.constant 86 : index
    %450 = memref.load %arg1[%c86] : memref<98xf32, #tpu.memory_space<smem>>
    %451 = vector.broadcast %449 : f32 to vector<2x256xf32>
    %452 = arith.mulf %451, %1 : vector<2x256xf32>
    %453 = vector.broadcast %450 : f32 to vector<2x256xf32>
    %454 = arith.mulf %453, %4 : vector<2x256xf32>
    %455 = arith.addf %452, %454 : vector<2x256xf32>
    %c225_i32 = arith.constant 225 : i32
    %456 = tpu.dynamic_rotate %455 by %c225_i32 dim 1 : vector<2x256xf32>, i32 -> vector<2x256xf32>
    %c37_80 = arith.constant 37 : index
    %c0_81 = arith.constant 0 : index
    %457 = vector.load %arg2[%c37_80, %c0_81] : memref<49x256xf32, #tpu.memory_space<vmem>>, vector<1x256xf32>
    %458 = vector.broadcast %457 : vector<1x256xf32> to vector<2x256xf32>
    %459 = arith.mulf %458, %456 : vector<2x256xf32>
    %460 = arith.addf %448, %459 : vector<2x256xf32>
    %c38 = arith.constant 38 : index
    %461 = memref.load %arg1[%c38] : memref<98xf32, #tpu.memory_space<smem>>
    %c87 = arith.constant 87 : index
    %462 = memref.load %arg1[%c87] : memref<98xf32, #tpu.memory_space<smem>>
    %463 = vector.broadcast %461 : f32 to vector<2x256xf32>
    %464 = arith.mulf %463, %1 : vector<2x256xf32>
    %465 = vector.broadcast %462 : f32 to vector<2x256xf32>
    %466 = arith.mulf %465, %4 : vector<2x256xf32>
    %467 = arith.addf %464, %466 : vector<2x256xf32>
    %c224_i32 = arith.constant 224 : i32
    %468 = tpu.dynamic_rotate %467 by %c224_i32 dim 1 : vector<2x256xf32>, i32 -> vector<2x256xf32>
    %c38_82 = arith.constant 38 : index
    %c0_83 = arith.constant 0 : index
    %469 = vector.load %arg2[%c38_82, %c0_83] : memref<49x256xf32, #tpu.memory_space<vmem>>, vector<1x256xf32>
    %470 = vector.broadcast %469 : vector<1x256xf32> to vector<2x256xf32>
    %471 = arith.mulf %470, %468 : vector<2x256xf32>
    %472 = arith.addf %460, %471 : vector<2x256xf32>
    %c39 = arith.constant 39 : index
    %473 = memref.load %arg1[%c39] : memref<98xf32, #tpu.memory_space<smem>>
    %c88 = arith.constant 88 : index
    %474 = memref.load %arg1[%c88] : memref<98xf32, #tpu.memory_space<smem>>
    %475 = vector.broadcast %473 : f32 to vector<2x256xf32>
    %476 = arith.mulf %475, %1 : vector<2x256xf32>
    %477 = vector.broadcast %474 : f32 to vector<2x256xf32>
    %478 = arith.mulf %477, %4 : vector<2x256xf32>
    %479 = arith.addf %476, %478 : vector<2x256xf32>
    %c223_i32 = arith.constant 223 : i32
    %480 = tpu.dynamic_rotate %479 by %c223_i32 dim 1 : vector<2x256xf32>, i32 -> vector<2x256xf32>
    %c39_84 = arith.constant 39 : index
    %c0_85 = arith.constant 0 : index
    %481 = vector.load %arg2[%c39_84, %c0_85] : memref<49x256xf32, #tpu.memory_space<vmem>>, vector<1x256xf32>
    %482 = vector.broadcast %481 : vector<1x256xf32> to vector<2x256xf32>
    %483 = arith.mulf %482, %480 : vector<2x256xf32>
    %484 = arith.addf %472, %483 : vector<2x256xf32>
    %c40 = arith.constant 40 : index
    %485 = memref.load %arg1[%c40] : memref<98xf32, #tpu.memory_space<smem>>
    %c89 = arith.constant 89 : index
    %486 = memref.load %arg1[%c89] : memref<98xf32, #tpu.memory_space<smem>>
    %487 = vector.broadcast %485 : f32 to vector<2x256xf32>
    %488 = arith.mulf %487, %1 : vector<2x256xf32>
    %489 = vector.broadcast %486 : f32 to vector<2x256xf32>
    %490 = arith.mulf %489, %4 : vector<2x256xf32>
    %491 = arith.addf %488, %490 : vector<2x256xf32>
    %c222_i32 = arith.constant 222 : i32
    %492 = tpu.dynamic_rotate %491 by %c222_i32 dim 1 : vector<2x256xf32>, i32 -> vector<2x256xf32>
    %c40_86 = arith.constant 40 : index
    %c0_87 = arith.constant 0 : index
    %493 = vector.load %arg2[%c40_86, %c0_87] : memref<49x256xf32, #tpu.memory_space<vmem>>, vector<1x256xf32>
    %494 = vector.broadcast %493 : vector<1x256xf32> to vector<2x256xf32>
    %495 = arith.mulf %494, %492 : vector<2x256xf32>
    %496 = arith.addf %484, %495 : vector<2x256xf32>
    %c41 = arith.constant 41 : index
    %497 = memref.load %arg1[%c41] : memref<98xf32, #tpu.memory_space<smem>>
    %c90 = arith.constant 90 : index
    %498 = memref.load %arg1[%c90] : memref<98xf32, #tpu.memory_space<smem>>
    %499 = vector.broadcast %497 : f32 to vector<2x256xf32>
    %500 = arith.mulf %499, %1 : vector<2x256xf32>
    %501 = vector.broadcast %498 : f32 to vector<2x256xf32>
    %502 = arith.mulf %501, %4 : vector<2x256xf32>
    %503 = arith.addf %500, %502 : vector<2x256xf32>
    %c221_i32 = arith.constant 221 : i32
    %504 = tpu.dynamic_rotate %503 by %c221_i32 dim 1 : vector<2x256xf32>, i32 -> vector<2x256xf32>
    %c41_88 = arith.constant 41 : index
    %c0_89 = arith.constant 0 : index
    %505 = vector.load %arg2[%c41_88, %c0_89] : memref<49x256xf32, #tpu.memory_space<vmem>>, vector<1x256xf32>
    %506 = vector.broadcast %505 : vector<1x256xf32> to vector<2x256xf32>
    %507 = arith.mulf %506, %504 : vector<2x256xf32>
    %508 = arith.addf %496, %507 : vector<2x256xf32>
    %c42 = arith.constant 42 : index
    %509 = memref.load %arg1[%c42] : memref<98xf32, #tpu.memory_space<smem>>
    %c91 = arith.constant 91 : index
    %510 = memref.load %arg1[%c91] : memref<98xf32, #tpu.memory_space<smem>>
    %511 = vector.broadcast %509 : f32 to vector<2x256xf32>
    %512 = arith.mulf %511, %1 : vector<2x256xf32>
    %513 = vector.broadcast %510 : f32 to vector<2x256xf32>
    %514 = arith.mulf %513, %4 : vector<2x256xf32>
    %515 = arith.addf %512, %514 : vector<2x256xf32>
    %c211_i32 = arith.constant 211 : i32
    %516 = tpu.dynamic_rotate %515 by %c211_i32 dim 1 : vector<2x256xf32>, i32 -> vector<2x256xf32>
    %c42_90 = arith.constant 42 : index
    %c0_91 = arith.constant 0 : index
    %517 = vector.load %arg2[%c42_90, %c0_91] : memref<49x256xf32, #tpu.memory_space<vmem>>, vector<1x256xf32>
    %518 = vector.broadcast %517 : vector<1x256xf32> to vector<2x256xf32>
    %519 = arith.mulf %518, %516 : vector<2x256xf32>
    %520 = arith.addf %508, %519 : vector<2x256xf32>
    %c43 = arith.constant 43 : index
    %521 = memref.load %arg1[%c43] : memref<98xf32, #tpu.memory_space<smem>>
    %c92 = arith.constant 92 : index
    %522 = memref.load %arg1[%c92] : memref<98xf32, #tpu.memory_space<smem>>
    %523 = vector.broadcast %521 : f32 to vector<2x256xf32>
    %524 = arith.mulf %523, %1 : vector<2x256xf32>
    %525 = vector.broadcast %522 : f32 to vector<2x256xf32>
    %526 = arith.mulf %525, %4 : vector<2x256xf32>
    %527 = arith.addf %524, %526 : vector<2x256xf32>
    %c210_i32 = arith.constant 210 : i32
    %528 = tpu.dynamic_rotate %527 by %c210_i32 dim 1 : vector<2x256xf32>, i32 -> vector<2x256xf32>
    %c43_92 = arith.constant 43 : index
    %c0_93 = arith.constant 0 : index
    %529 = vector.load %arg2[%c43_92, %c0_93] : memref<49x256xf32, #tpu.memory_space<vmem>>, vector<1x256xf32>
    %530 = vector.broadcast %529 : vector<1x256xf32> to vector<2x256xf32>
    %531 = arith.mulf %530, %528 : vector<2x256xf32>
    %532 = arith.addf %520, %531 : vector<2x256xf32>
    %c44 = arith.constant 44 : index
    %533 = memref.load %arg1[%c44] : memref<98xf32, #tpu.memory_space<smem>>
    %c93 = arith.constant 93 : index
    %534 = memref.load %arg1[%c93] : memref<98xf32, #tpu.memory_space<smem>>
    %535 = vector.broadcast %533 : f32 to vector<2x256xf32>
    %536 = arith.mulf %535, %1 : vector<2x256xf32>
    %537 = vector.broadcast %534 : f32 to vector<2x256xf32>
    %538 = arith.mulf %537, %4 : vector<2x256xf32>
    %539 = arith.addf %536, %538 : vector<2x256xf32>
    %c209_i32 = arith.constant 209 : i32
    %540 = tpu.dynamic_rotate %539 by %c209_i32 dim 1 : vector<2x256xf32>, i32 -> vector<2x256xf32>
    %c44_94 = arith.constant 44 : index
    %c0_95 = arith.constant 0 : index
    %541 = vector.load %arg2[%c44_94, %c0_95] : memref<49x256xf32, #tpu.memory_space<vmem>>, vector<1x256xf32>
    %542 = vector.broadcast %541 : vector<1x256xf32> to vector<2x256xf32>
    %543 = arith.mulf %542, %540 : vector<2x256xf32>
    %544 = arith.addf %532, %543 : vector<2x256xf32>
    %c45 = arith.constant 45 : index
    %545 = memref.load %arg1[%c45] : memref<98xf32, #tpu.memory_space<smem>>
    %c94 = arith.constant 94 : index
    %546 = memref.load %arg1[%c94] : memref<98xf32, #tpu.memory_space<smem>>
    %547 = vector.broadcast %545 : f32 to vector<2x256xf32>
    %548 = arith.mulf %547, %1 : vector<2x256xf32>
    %549 = vector.broadcast %546 : f32 to vector<2x256xf32>
    %550 = arith.mulf %549, %4 : vector<2x256xf32>
    %551 = arith.addf %548, %550 : vector<2x256xf32>
    %c208_i32 = arith.constant 208 : i32
    %552 = tpu.dynamic_rotate %551 by %c208_i32 dim 1 : vector<2x256xf32>, i32 -> vector<2x256xf32>
    %c45_96 = arith.constant 45 : index
    %c0_97 = arith.constant 0 : index
    %553 = vector.load %arg2[%c45_96, %c0_97] : memref<49x256xf32, #tpu.memory_space<vmem>>, vector<1x256xf32>
    %554 = vector.broadcast %553 : vector<1x256xf32> to vector<2x256xf32>
    %555 = arith.mulf %554, %552 : vector<2x256xf32>
    %556 = arith.addf %544, %555 : vector<2x256xf32>
    %c46 = arith.constant 46 : index
    %557 = memref.load %arg1[%c46] : memref<98xf32, #tpu.memory_space<smem>>
    %c95 = arith.constant 95 : index
    %558 = memref.load %arg1[%c95] : memref<98xf32, #tpu.memory_space<smem>>
    %559 = vector.broadcast %557 : f32 to vector<2x256xf32>
    %560 = arith.mulf %559, %1 : vector<2x256xf32>
    %561 = vector.broadcast %558 : f32 to vector<2x256xf32>
    %562 = arith.mulf %561, %4 : vector<2x256xf32>
    %563 = arith.addf %560, %562 : vector<2x256xf32>
    %c207_i32 = arith.constant 207 : i32
    %564 = tpu.dynamic_rotate %563 by %c207_i32 dim 1 : vector<2x256xf32>, i32 -> vector<2x256xf32>
    %c46_98 = arith.constant 46 : index
    %c0_99 = arith.constant 0 : index
    %565 = vector.load %arg2[%c46_98, %c0_99] : memref<49x256xf32, #tpu.memory_space<vmem>>, vector<1x256xf32>
    %566 = vector.broadcast %565 : vector<1x256xf32> to vector<2x256xf32>
    %567 = arith.mulf %566, %564 : vector<2x256xf32>
    %568 = arith.addf %556, %567 : vector<2x256xf32>
    %c47 = arith.constant 47 : index
    %569 = memref.load %arg1[%c47] : memref<98xf32, #tpu.memory_space<smem>>
    %c96 = arith.constant 96 : index
    %570 = memref.load %arg1[%c96] : memref<98xf32, #tpu.memory_space<smem>>
    %571 = vector.broadcast %569 : f32 to vector<2x256xf32>
    %572 = arith.mulf %571, %1 : vector<2x256xf32>
    %573 = vector.broadcast %570 : f32 to vector<2x256xf32>
    %574 = arith.mulf %573, %4 : vector<2x256xf32>
    %575 = arith.addf %572, %574 : vector<2x256xf32>
    %c206_i32 = arith.constant 206 : i32
    %576 = tpu.dynamic_rotate %575 by %c206_i32 dim 1 : vector<2x256xf32>, i32 -> vector<2x256xf32>
    %c47_100 = arith.constant 47 : index
    %c0_101 = arith.constant 0 : index
    %577 = vector.load %arg2[%c47_100, %c0_101] : memref<49x256xf32, #tpu.memory_space<vmem>>, vector<1x256xf32>
    %578 = vector.broadcast %577 : vector<1x256xf32> to vector<2x256xf32>
    %579 = arith.mulf %578, %576 : vector<2x256xf32>
    %580 = arith.addf %568, %579 : vector<2x256xf32>
    %c48 = arith.constant 48 : index
    %581 = memref.load %arg1[%c48] : memref<98xf32, #tpu.memory_space<smem>>
    %c97 = arith.constant 97 : index
    %582 = memref.load %arg1[%c97] : memref<98xf32, #tpu.memory_space<smem>>
    %583 = vector.broadcast %581 : f32 to vector<2x256xf32>
    %584 = arith.mulf %583, %1 : vector<2x256xf32>
    %585 = vector.broadcast %582 : f32 to vector<2x256xf32>
    %586 = arith.mulf %585, %4 : vector<2x256xf32>
    %587 = arith.addf %584, %586 : vector<2x256xf32>
    %c205_i32 = arith.constant 205 : i32
    %588 = tpu.dynamic_rotate %587 by %c205_i32 dim 1 : vector<2x256xf32>, i32 -> vector<2x256xf32>
    %c48_102 = arith.constant 48 : index
    %c0_103 = arith.constant 0 : index
    %589 = vector.load %arg2[%c48_102, %c0_103] : memref<49x256xf32, #tpu.memory_space<vmem>>, vector<1x256xf32>
    %590 = vector.broadcast %589 : vector<1x256xf32> to vector<2x256xf32>
    %591 = arith.mulf %590, %588 : vector<2x256xf32>
    %592 = arith.addf %580, %591 : vector<2x256xf32>
    %593 = arith.negf %592 : vector<2x256xf32>
    %594 = math.exp %593 : vector<2x256xf32>
    %cst_104 = arith.constant 1.000000e+00 : f32
    %595 = vector.broadcast %cst_104 : f32 to vector<2x256xf32>
    %596 = arith.addf %595, %594 : vector<2x256xf32>
    %597 = arith.divf %595, %596 : vector<2x256xf32>
    %c0_105 = arith.constant 0 : index
    %c0_106 = arith.constant 0 : index
    %598 = vector.load %arg4[%c0_105, %c0_106] : memref<2x256xf32, #tpu.memory_space<vmem>>, vector<2x256xf32>
    tpu.vector_store %arg4[%c0_105, %c0_106], %597 {strides = array<i32>} : memref<2x256xf32, #tpu.memory_space<vmem>>, vector<2x256xf32>,
    return
  }
  func.func @transform_0(%arg0: i32) -> i32 {
    %c0_i32 = arith.constant 0 : i32
    %c0_i32_0 = arith.constant 0 : i32
    return %c0_i32 : i32
  }
  func.func @transform_1(%arg0: i32) -> (i32, i32) {
    %c0_i32 = arith.constant 0 : i32
    %c0_i32_0 = arith.constant 0 : i32
    %c0_i32_1 = arith.constant 0 : i32
    return %c0_i32, %c0_i32_0 : i32, i32
  }
  func.func @transform_2(%arg0: i32) -> (i32, i32, i32) {
    %c0_i32 = arith.constant 0 : i32
    %c0_i32_0 = arith.constant 0 : i32
    %c0_i32_1 = arith.constant 0 : i32
    return %c0_i32, %arg0, %c0_i32_0 : i32, i32, i32
  }
  func.func @transform_3(%arg0: i32) -> (i32, i32) {
    %c0_i32 = arith.constant 0 : i32
    %c0_i32_0 = arith.constant 0 : i32
    return %arg0, %c0_i32 : i32, i32
  }
}

</mosaic_0001>

<llo_original>
// kernel: channel_spatial_attention.1
$region0: #{channel_spatial_attention.1}
  #allocation0 [shape = 'u32[]', space=smem, size = 0x4, offset = 0x4, fixed_abs, tag = 'smem constant byte address 0x4 - core index']
  #allocation1 [shape = 'u32[72,128]{1,0:T(1,128)}', space=vmem, size = 0x9000, scoped, tag = 'internal scratch']
  %s0 = inlined_call_operand.vmem [shape: f32[98], index: 0, kind: input, shape index: {}]
  %s1 = inlined_call_operand.vmem [shape: f32[49,256], index: 1, kind: input, shape index: {}]
  %s2 = inlined_call_operand.vmem [shape: f32[4,2,256], index: 2, kind: input, shape index: {}]
  %s3 = inlined_call_operand.vmem [shape: f32[2,256], index: 3, kind: output, shape index: {}]
  %s4 = sld [smem:[#allocation0]]
  $region26: #{channel_spatial_attention.1} parent=0
    _
  %s6 = ssub.s32 1, %s4
  %s7 = scalar_select 0, %s6, %s4
  $region1: #{channel_spatial_attention.1} parent=0
    #allocation2 [shape = 'u8[512]{0}', space=smem, size = 0x200, scoped, tag = 'input window, operand 0, single buffered']
    #allocation3 [shape = 's32[1]{0}', space=sflag, size = 0x4, scoped, tag = 'scoped memory for channel_spatial_attention.1']
    %8 = vsyncpa [#allocation3], 0
    // Predicated region
    $region2: #{channel_spatial_attention.1} parent=1 // pred_check
      _
    $region3: #{channel_spatial_attention.1} parent=1 // pred_check_branch
      %10 = sbr.rel (0) target = $region5
    $region4: #{channel_spatial_attention.1} parent=1 // pred_region
      %12 = vsyncadd [#allocation3], 0
      %s14 = sshll.u32 %s0, 4
      %s15 = int_to_ptr.vmem [resolvable:$true] %s14
      %17 = dma.vmem_to_smem %s15, 16, [#allocation2], [#allocation3]
    $region5: #{channel_spatial_attention.1} parent=1 // pred_fallthru
      _
    // Predicated region
    $region6: #{channel_spatial_attention.1} parent=1 // pred_check
      _
    $region7: #{channel_spatial_attention.1} parent=1 // pred_check_branch
      %19 = sbr.rel (0) target = $region9
    $region8: #{channel_spatial_attention.1} parent=1 // pred_region
      _
    $region9: #{channel_spatial_attention.1} parent=1 // pred_fallthru
      _
    // Predicated region
    $region10: #{channel_spatial_attention.1} parent=1 // pred_check
      _
    $region11: #{channel_spatial_attention.1} parent=1 // pred_check_branch
      %21 = sbr.rel (0) target = $region13
    $region12: #{channel_spatial_attention.1} parent=1 // pred_region
      _
    $region13: #{channel_spatial_attention.1} parent=1 // pred_fallthru
      _
    // Predicated region
    $region14: #{channel_spatial_attention.1} parent=1 // pred_check
      _
    $region15: #{channel_spatial_attention.1} parent=1 // pred_check_branch
      %23 = sbr.rel (0) target = $region17
    $region16: #{channel_spatial_attention.1} parent=1 // pred_region
      %25 = dma.done [#allocation3], 16
    $region17: #{channel_spatial_attention.1} parent=1 // pred_fallthru
      _
    %26 = sfence
    %v27 = vld [vmem:[%s2] sm:$0xf]
    %v28 = vld [vmem:[%s2 + $0x4] sm:$0xf]
    %v29 = vld [vmem:[%s2 + $0x8] sm:$0xf]
    %v30 = vld [vmem:[%s2 + $0xc] sm:$0xf]
    %vm31 = vcmask 1041408
    %vm32 = vcmask 1043458
    %vm33 = vmor %vm32, %vm31
    %v34 = vsel %vm33, %v27, -inf
    %v35 = vsel %vm33, %v28, -inf
    %v36 = vsel %vm33, %v29, -inf
    %v37 = vsel %vm33, %v30, -inf
    %v38 = vmax.f32 %v34, %v35
    %v39 = vmax.f32 %v36, %v37
    %v40 = vmax.f32 %v38, %v39
    %45 = vst [vmem:[#allocation1] ss:$4 sm:$0xff] %v27
    %v46 = vld.sshfl [vmem:[#allocation1] sm:$0xff pattern:$0x73625140]
    %v47 = vld.sshfl [vmem:[#allocation1 + $0x8] sm:$0xff pattern:$0x73625140]
    %s48 = scalar_lea.vmem [#allocation1], 32
    %49 = vst [vmem:[%s48] ss:$4 sm:$0xff] %v28
    %v50 = vld.sshfl [vmem:[#allocation1 + $0x20] sm:$0xff pattern:$0x73625140]
    %v51 = vld.sshfl [vmem:[#allocation1 + $0x28] sm:$0xff pattern:$0x73625140]
    %52 = vst [vmem:[#allocation1] ss:$4 sm:$0xff] %v29
    %v53 = vld.sshfl [vmem:[#allocation1] sm:$0xff pattern:$0x73625140]
    %v54 = vld.sshfl [vmem:[#allocation1 + $0x8] sm:$0xff pattern:$0x73625140]
    %55 = vst [vmem:[%s48] ss:$4 sm:$0xff] %v30
    %v56 = vld.sshfl [vmem:[#allocation1 + $0x20] sm:$0xff pattern:$0x73625140]
    %v57 = vld.sshfl [vmem:[#allocation1 + $0x28] sm:$0xff pattern:$0x73625140]
    %v66 = vsel %vm31, %v46, 0.0
    %v67 = vsel %vm31, %v50, 0.0
    %v68 = vadd.f32 %v66, %v67
    %v69 = vsel %vm31, %v53, 0.0
    %v70 = vadd.f32 %v68, %v69
    %v71 = vsel %vm31, %v56, 0.0
    %v72 = vadd.f32 %v70, %v71
    %v73 = vsel %vm31, %v47, 0.0
    %v74 = vsel %vm31, %v51, 0.0
    %v75 = vadd.f32 %v73, %v74
    %v76 = vsel %vm31, %v54, 0.0
    %v77 = vadd.f32 %v75, %v76
    %v78 = vsel %vm31, %v57, 0.0
    %v79 = vadd.f32 %v77, %v78
    %v80 = vmul.f32 %v72, 0.25
    %v81 = vmul.f32 %v79, 0.25
    %s82 = sld [smem:[#allocation2]]
    %s83 = sld [smem:[#allocation2 + $0x31]]
    %v84 = vstv %s82
    %v85 = vmul.f32 %v84, %v40
    %v86 = vstv %s83
    %v87 = vmul.f32 %v86, %v80
    %v88 = vmul.f32 %v86, %v81
    %v91 = vrot.slane %v88, 6
    %v92 = vsel %vm31, %v87, %v91
    %v94 = vadd.f32 %v85, %v92
    %96 = vst [vmem:[#allocation1] ss:$4 sm:$0xff] %v94
    %v97 = vld.sshfl [vmem:[#allocation1] sm:$0xff pattern:$0x73625140]
    %v98 = vld.sshfl [vmem:[#allocation1 + $0x8] sm:$0xff pattern:$0x73625140]
    %101 = vrot.lane.b32.xlu0 %v97, 51
    %v102 = vpop.permute.xlu0 %101
    %103 = vrot.lane.b32.xlu0 %v98, 51
    %v104 = vpop.permute.xlu0 %103
    %v105 = vlaneseq
    %v106 = vand.u32 %v105, 127
    %vm107 = vcmp.lt.s32.totalorder %v106, 51
    %v108 = vsel %vm107, %v102, %v104
    %v109 = vsel %vm107, %v104, %v102
    %v110 = vld [vmem:[%s1] ss:$8 sm:$0x3]
    %v112 = vperm.slane %v110, 0
    %v113 = vperm.slane %v110, 1
    %v116 = vmul.f32 %v112, %v109
    %v117 = vmul.f32 %v113, %v108
    %v118 = vadd.f32 %v116, 0.0
    %v119 = vadd.f32 %v117, 0.0
    %s120 = sld [smem:[#allocation2 + $0x1]]
    %s121 = sld [smem:[#allocation2 + $0x32]]
    %v122 = vstv %s120
    %v123 = vmul.f32 %v122, %v40
    %v124 = vstv %s121
    %v125 = vmul.f32 %v124, %v80
    %v126 = vmul.f32 %v124, %v81
    %v129 = vrot.slane %v126, 6
    %v130 = vsel %vm31, %v125, %v129
    %v132 = vadd.f32 %v123, %v130
    %134 = vst [vmem:[#allocation1] ss:$4 sm:$0xff] %v132
    %v135 = vld.sshfl [vmem:[#allocation1] sm:$0xff pattern:$0x73625140]
    %v136 = vld.sshfl [vmem:[#allocation1 + $0x8] sm:$0xff pattern:$0x73625140]
    %139 = vrot.lane.b32.xlu0 %v135, 50
    %v140 = vpop.permute.xlu0 %139
    %141 = vrot.lane.b32.xlu0 %v136, 50
    %v142 = vpop.permute.xlu0 %141
    %vm143 = vcmp.lt.s32.totalorder %v106, 50
    %v144 = vsel %vm143, %v140, %v142
    %v145 = vsel %vm143, %v142, %v140
    %s146 = scalar_lea.vmem %s1, 1
    %v147 = vld [vmem:[%s146] ss:$8 sm:$0x3]
    %v149 = vperm.slane %v147, 0
    %v150 = vperm.slane %v147, 1
    %v153 = vmul.f32 %v149, %v145
    %v154 = vmul.f32 %v150, %v144
    %v155 = vadd.f32 %v118, %v153
    %v156 = vadd.f32 %v119, %v154
    %s157 = sld [smem:[#allocation2 + $0x2]]
    %s158 = sld [smem:[#allocation2 + $0x33]]
    %v159 = vstv %s157
    %v160 = vmul.f32 %v159, %v40
    %v161 = vstv %s158
    %v162 = vmul.f32 %v161, %v80
    %v163 = vmul.f32 %v161, %v81
    %v166 = vrot.slane %v163, 6
    %v167 = vsel %vm31, %v162, %v166
    %v169 = vadd.f32 %v160, %v167
    %171 = vst [vmem:[#allocation1] ss:$4 sm:$0xff] %v169
    %v172 = vld.sshfl [vmem:[#allocation1] sm:$0xff pattern:$0x73625140]
    %v173 = vld.sshfl [vmem:[#allocation1 + $0x8] sm:$0xff pattern:$0x73625140]
    %176 = vrot.lane.b32.xlu0 %v172, 49
    %v177 = vpop.permute.xlu0 %176
    %178 = vrot.lane.b32.xlu0 %v173, 49
    %v179 = vpop.permute.xlu0 %178
    %vm180 = vcmp.lt.s32.totalorder %v106, 49
    %v181 = vsel %vm180, %v177, %v179
    %v182 = vsel %vm180, %v179, %v177
    %s183 = scalar_lea.vmem %s1, 2
    %v184 = vld [vmem:[%s183] ss:$8 sm:$0x3]
    %v186 = vperm.slane %v184, 0
    %v187 = vperm.slane %v184, 1
    %v190 = vmul.f32 %v186, %v182
    %v191 = vmul.f32 %v187, %v181
    %v192 = vadd.f32 %v155, %v190
    %v193 = vadd.f32 %v156, %v191
    %s194 = sld [smem:[#allocation2 + $0x3]]
    %s195 = sld [smem:[#allocation2 + $0x34]]
    %v196 = vstv %s194
    %v197 = vmul.f32 %v196, %v40
    %v198 = vstv %s195
    %v199 = vmul.f32 %v198, %v80
    %v200 = vmul.f32 %v198, %v81
    %v203 = vrot.slane %v200, 6
    %v204 = vsel %vm31, %v199, %v203
    %v206 = vadd.f32 %v197, %v204
    %208 = vst [vmem:[#allocation1] ss:$4 sm:$0xff] %v206
    %v209 = vld.sshfl [vmem:[#allocation1] sm:$0xff pattern:$0x73625140]
    %v210 = vld.sshfl [vmem:[#allocation1 + $0x8] sm:$0xff pattern:$0x73625140]
    %213 = vrot.lane.b32.xlu0 %v209, 48
    %v214 = vpop.permute.xlu0 %213
    %215 = vrot.lane.b32.xlu0 %v210, 48
    %v216 = vpop.permute.xlu0 %215
    %vm217 = vcmp.lt.s32.totalorder %v106, 48
    %v218 = vsel %vm217, %v214, %v216
    %v219 = vsel %vm217, %v216, %v214
    %s220 = scalar_lea.vmem %s1, 3
    %v221 = vld [vmem:[%s220] ss:$8 sm:$0x3]
    %v223 = vperm.slane %v221, 0
    %v224 = vperm.slane %v221, 1
    %v227 = vmul.f32 %v223, %v219
    %v228 = vmul.f32 %v224, %v218
    %v229 = vadd.f32 %v192, %v227
    %v230 = vadd.f32 %v193, %v228
    %s231 = sld [smem:[#allocation2 + $0x4]]
    %s232 = sld [smem:[#allocation2 + $0x35]]
    %v233 = vstv %s231
    %v234 = vmul.f32 %v233, %v40
    %v235 = vstv %s232
    %v236 = vmul.f32 %v235, %v80
    %v237 = vmul.f32 %v235, %v81
    %v240 = vrot.slane %v237, 6
    %v241 = vsel %vm31, %v236, %v240
    %v243 = vadd.f32 %v234, %v241
    %245 = vst [vmem:[#allocation1] ss:$4 sm:$0xff] %v243
    %v246 = vld.sshfl [vmem:[#allocation1] sm:$0xff pattern:$0x73625140]
    %v247 = vld.sshfl [vmem:[#allocation1 + $0x8] sm:$0xff pattern:$0x73625140]
    %250 = vrot.lane.b32.xlu0 %v246, 47
    %v251 = vpop.permute.xlu0 %250
    %252 = vrot.lane.b32.xlu0 %v247, 47
    %v253 = vpop.permute.xlu0 %252
    %vm254 = vcmp.lt.s32.totalorder %v106, 47
    %v255 = vsel %vm254, %v251, %v253
    %v256 = vsel %vm254, %v253, %v251
    %s257 = scalar_lea.vmem %s1, 4
    %v258 = vld [vmem:[%s257] ss:$8 sm:$0x3]
    %v260 = vperm.slane %v258, 0
    %v261 = vperm.slane %v258, 1
    %v264 = vmul.f32 %v260, %v256
    %v265 = vmul.f32 %v261, %v255
    %v266 = vadd.f32 %v229, %v264
    %v267 = vadd.f32 %v230, %v265
    %s268 = sld [smem:[#allocation2 + $0x5]]
    %s269 = sld [smem:[#allocation2 + $0x36]]
    %v270 = vstv %s268
    %v271 = vmul.f32 %v270, %v40
    %v272 = vstv %s269
    %v273 = vmul.f32 %v272, %v80
    %v274 = vmul.f32 %v272, %v81
    %v277 = vrot.slane %v274, 6
    %v278 = vsel %vm31, %v273, %v277
    %v280 = vadd.f32 %v271, %v278
    %282 = vst [vmem:[#allocation1] ss:$4 sm:$0xff] %v280
    %v283 = vld.sshfl [vmem:[#allocation1] sm:$0xff pattern:$0x73625140]
    %v284 = vld.sshfl [vmem:[#allocation1 + $0x8] sm:$0xff pattern:$0x73625140]
    %287 = vrot.lane.b32.xlu0 %v283, 46
    %v288 = vpop.permute.xlu0 %287
    %289 = vrot.lane.b32.xlu0 %v284, 46
    %v290 = vpop.permute.xlu0 %289
    %vm291 = vcmp.lt.s32.totalorder %v106, 46
    %v292 = vsel %vm291, %v288, %v290
    %v293 = vsel %vm291, %v290, %v288
    %s294 = scalar_lea.vmem %s1, 5
    %v295 = vld [vmem:[%s294] ss:$8 sm:$0x3]
    %v297 = vperm.slane %v295, 0
    %v298 = vperm.slane %v295, 1
    %v301 = vmul.f32 %v297, %v293
    %v302 = vmul.f32 %v298, %v292
    %v303 = vadd.f32 %v266, %v301
    %v304 = vadd.f32 %v267, %v302
    %s305 = sld [smem:[#allocation2 + $0x6]]
    %s306 = sld [smem:[#allocation2 + $0x37]]
    %v307 = vstv %s305
    %v308 = vmul.f32 %v307, %v40
    %v309 = vstv %s306
    %v310 = vmul.f32 %v309, %v80
    %v311 = vmul.f32 %v309, %v81
    %v314 = vrot.slane %v311, 6
    %v315 = vsel %vm31, %v310, %v314
    %v317 = vadd.f32 %v308, %v315
    %319 = vst [vmem:[#allocation1] ss:$4 sm:$0xff] %v317
    %v320 = vld.sshfl [vmem:[#allocation1] sm:$0xff pattern:$0x73625140]
    %v321 = vld.sshfl [vmem:[#allocation1 + $0x8] sm:$0xff pattern:$0x73625140]
    %324 = vrot.lane.b32.xlu0 %v320, 45
    %v325 = vpop.permute.xlu0 %324
    %326 = vrot.lane.b32.xlu0 %v321, 45
    %v327 = vpop.permute.xlu0 %326
    %vm328 = vcmp.lt.s32.totalorder %v106, 45
    %v329 = vsel %vm328, %v325, %v327
    %v330 = vsel %vm328, %v327, %v325
    %s331 = scalar_lea.vmem %s1, 6
    %v332 = vld [vmem:[%s331] ss:$8 sm:$0x3]
    %v334 = vperm.slane %v332, 0
    %v335 = vperm.slane %v332, 1
    %v338 = vmul.f32 %v334, %v330
    %v339 = vmul.f32 %v335, %v329
    %v340 = vadd.f32 %v303, %v338
    %v341 = vadd.f32 %v304, %v339
    %s342 = sld [smem:[#allocation2 + $0x7]]
    %s343 = sld [smem:[#allocation2 + $0x38]]
    %v344 = vstv %s342
    %v345 = vmul.f32 %v344, %v40
    %v346 = vstv %s343
    %v347 = vmul.f32 %v346, %v80
    %v348 = vmul.f32 %v346, %v81
    %v351 = vrot.slane %v348, 6
    %v352 = vsel %vm31, %v347, %v351
    %v354 = vadd.f32 %v345, %v352
    %356 = vst [vmem:[#allocation1] ss:$4 sm:$0xff] %v354
    %v357 = vld.sshfl [vmem:[#allocation1] sm:$0xff pattern:$0x73625140]
    %v358 = vld.sshfl [vmem:[#allocation1 + $0x8] sm:$0xff pattern:$0x73625140]
    %361 = vrot.lane.b32.xlu0 %v357, 35
    %v362 = vpop.permute.xlu0 %361
    %363 = vrot.lane.b32.xlu0 %v358, 35
    %v364 = vpop.permute.xlu0 %363
    %vm365 = vcmp.lt.s32.totalorder %v106, 35
    %v366 = vsel %vm365, %v362, %v364
    %v367 = vsel %vm365, %v364, %v362
    %s368 = scalar_lea.vmem %s1, 7
    %v369 = vld [vmem:[%s368] ss:$8 sm:$0x3]
    %v371 = vperm.slane %v369, 0
    %v372 = vperm.slane %v369, 1
    %v375 = vmul.f32 %v371, %v367
    %v376 = vmul.f32 %v372, %v366
    %v377 = vadd.f32 %v340, %v375
    %v378 = vadd.f32 %v341, %v376
    %s379 = sld [smem:[#allocation2 + $0x8]]
    %s380 = sld [smem:[#allocation2 + $0x39]]
    %v381 = vstv %s379
    %v382 = vmul.f32 %v381, %v40
    %v383 = vstv %s380
    %v384 = vmul.f32 %v383, %v80
    %v385 = vmul.f32 %v383, %v81
    %v388 = vrot.slane %v385, 6
    %v389 = vsel %vm31, %v384, %v388
    %v391 = vadd.f32 %v382, %v389
    %393 = vst [vmem:[#allocation1] ss:$4 sm:$0xff] %v391
    %v394 = vld.sshfl [vmem:[#allocation1] sm:$0xff pattern:$0x73625140]
    %v395 = vld.sshfl [vmem:[#allocation1 + $0x8] sm:$0xff pattern:$0x73625140]
    %398 = vrot.lane.b32.xlu0 %v394, 34
    %v399 = vpop.permute.xlu0 %398
    %400 = vrot.lane.b32.xlu0 %v395, 34
    %v401 = vpop.permute.xlu0 %400
    %vm402 = vcmp.lt.s32.totalorder %v106, 34
    %v403 = vsel %vm402, %v399, %v401
    %v404 = vsel %vm402, %v401, %v399
    %s405 = scalar_lea.vmem %s1, 16
    %v406 = vld [vmem:[%s405] ss:$8 sm:$0x3]
    %v408 = vperm.slane %v406, 0
    %v409 = vperm.slane %v406, 1
    %v412 = vmul.f32 %v408, %v404
    %v413 = vmul.f32 %v409, %v403
    %v414 = vadd.f32 %v377, %v412
    %v415 = vadd.f32 %v378, %v413
    %s416 = sld [smem:[#allocation2 + $0x9]]
    %s417 = sld [smem:[#allocation2 + $0x3a]]
    %v418 = vstv %s416
    %v419 = vmul.f32 %v418, %v40
    %v420 = vstv %s417
    %v421 = vmul.f32 %v420, %v80
    %v422 = vmul.f32 %v420, %v81
    %v425 = vrot.slane %v422, 6
    %v426 = vsel %vm31, %v421, %v425
    %v428 = vadd.f32 %v419, %v426
    %430 = vst [vmem:[#allocation1] ss:$4 sm:$0xff] %v428
    %v431 = vld.sshfl [vmem:[#allocation1] sm:$0xff pattern:$0x73625140]
    %v432 = vld.sshfl [vmem:[#allocation1 + $0x8] sm:$0xff pattern:$0x73625140]
    %435 = vrot.lane.b32.xlu0 %v431, 33
    %v436 = vpop.permute.xlu0 %435
    %437 = vrot.lane.b32.xlu0 %v432, 33
    %v438 = vpop.permute.xlu0 %437
    %vm439 = vcmp.lt.s32.totalorder %v106, 33
    %v440 = vsel %vm439, %v436, %v438
    %v441 = vsel %vm439, %v438, %v436
    %s442 = scalar_lea.vmem %s1, 17
    %v443 = vld [vmem:[%s442] ss:$8 sm:$0x3]
    %v445 = vperm.slane %v443, 0
    %v446 = vperm.slane %v443, 1
    %v449 = vmul.f32 %v445, %v441
    %v450 = vmul.f32 %v446, %v440
    %v451 = vadd.f32 %v414, %v449
    %v452 = vadd.f32 %v415, %v450
    %s453 = sld [smem:[#allocation2 + $0xa]]
    %s454 = sld [smem:[#allocation2 + $0x3b]]
    %v455 = vstv %s453
    %v456 = vmul.f32 %v455, %v40
    %v457 = vstv %s454
    %v458 = vmul.f32 %v457, %v80
    %v459 = vmul.f32 %v457, %v81
    %v462 = vrot.slane %v459, 6
    %v463 = vsel %vm31, %v458, %v462
    %v465 = vadd.f32 %v456, %v463
    %467 = vst [vmem:[#allocation1] ss:$4 sm:$0xff] %v465
    %v468 = vld.sshfl [vmem:[#allocation1] sm:$0xff pattern:$0x73625140]
    %v469 = vld.sshfl [vmem:[#allocation1 + $0x8] sm:$0xff pattern:$0x73625140]
    %472 = vrot.lane.b32.xlu0 %v468, 32
    %v473 = vpop.permute.xlu0 %472
    %474 = vrot.lane.b32.xlu0 %v469, 32
    %v475 = vpop.permute.xlu0 %474
    %vm476 = vcmp.lt.s32.totalorder %v106, 32
    %v477 = vsel %vm476, %v473, %v475
    %v478 = vsel %vm476, %v475, %v473
    %s479 = scalar_lea.vmem %s1, 18
    %v480 = vld [vmem:[%s479] ss:$8 sm:$0x3]
    %v482 = vperm.slane %v480, 0
    %v483 = vperm.slane %v480, 1
    %v486 = vmul.f32 %v482, %v478
    %v487 = vmul.f32 %v483, %v477
    %v488 = vadd.f32 %v451, %v486
    %v489 = vadd.f32 %v452, %v487
    %s490 = sld [smem:[#allocation2 + $0xb]]
    %s491 = sld [smem:[#allocation2 + $0x3c]]
    %v492 = vstv %s490
    %v493 = vmul.f32 %v492, %v40
    %v494 = vstv %s491
    %v495 = vmul.f32 %v494, %v80
    %v496 = vmul.f32 %v494, %v81
    %v499 = vrot.slane %v496, 6
    %v500 = vsel %vm31, %v495, %v499
    %v502 = vadd.f32 %v493, %v500
    %504 = vst [vmem:[#allocation1] ss:$4 sm:$0xff] %v502
    %v505 = vld.sshfl [vmem:[#allocation1] sm:$0xff pattern:$0x73625140]
    %v506 = vld.sshfl [vmem:[#allocation1 + $0x8] sm:$0xff pattern:$0x73625140]
    %509 = vrot.lane.b32.xlu0 %v505, 31
    %v510 = vpop.permute.xlu0 %509
    %511 = vrot.lane.b32.xlu0 %v506, 31
    %v512 = vpop.permute.xlu0 %511
    %vm513 = vcmp.lt.s32.totalorder %v106, 31
    %v514 = vsel %vm513, %v510, %v512
    %v515 = vsel %vm513, %v512, %v510
    %s516 = scalar_lea.vmem %s1, 19
    %v517 = vld [vmem:[%s516] ss:$8 sm:$0x3]
    %v519 = vperm.slane %v517, 0
    %v520 = vperm.slane %v517, 1
    %v523 = vmul.f32 %v519, %v515
    %v524 = vmul.f32 %v520, %v514
    %v525 = vadd.f32 %v488, %v523
    %v526 = vadd.f32 %v489, %v524
    %s527 = sld [smem:[#allocation2 + $0xc]]
    %s528 = sld [smem:[#allocation2 + $0x3d]]
    %v529 = vstv %s527
    %v530 = vmul.f32 %v529, %v40
    %v531 = vstv %s528
    %v532 = vmul.f32 %v531, %v80
    %v533 = vmul.f32 %v531, %v81
    %v536 = vrot.slane %v533, 6
    %v537 = vsel %vm31, %v532, %v536
    %v539 = vadd.f32 %v530, %v537
    %541 = vst [vmem:[#allocation1] ss:$4 sm:$0xff] %v539
    %v542 = vld.sshfl [vmem:[#allocation1] sm:$0xff pattern:$0x73625140]
    %v543 = vld.sshfl [vmem:[#allocation1 + $0x8] sm:$0xff pattern:$0x73625140]
    %546 = vrot.lane.b32.xlu0 %v542, 30
    %v547 = vpop.permute.xlu0 %546
    %548 = vrot.lane.b32.xlu0 %v543, 30
    %v549 = vpop.permute.xlu0 %548
    %vm550 = vcmp.lt.s32.totalorder %v106, 30
    %v551 = vsel %vm550, %v547, %v549
    %v552 = vsel %vm550, %v549, %v547
    %s553 = scalar_lea.vmem %s1, 20
    %v554 = vld [vmem:[%s553] ss:$8 sm:$0x3]
    %v556 = vperm.slane %v554, 0
    %v557 = vperm.slane %v554, 1
    %v560 = vmul.f32 %v556, %v552
    %v561 = vmul.f32 %v557, %v551
    %v562 = vadd.f32 %v525, %v560
    %v563 = vadd.f32 %v526, %v561
    %s564 = sld [smem:[#allocation2 + $0xd]]
    %s565 = sld [smem:[#allocation2 + $0x3e]]
    %v566 = vstv %s564
    %v567 = vmul.f32 %v566, %v40
    %v568 = vstv %s565
    %v569 = vmul.f32 %v568, %v80
    %v570 = vmul.f32 %v568, %v81
    %v573 = vrot.slane %v570, 6
    %v574 = vsel %vm31, %v569, %v573
    %v576 = vadd.f32 %v567, %v574
    %578 = vst [vmem:[#allocation1] ss:$4 sm:$0xff] %v576
    %v579 = vld.sshfl [vmem:[#allocation1] sm:$0xff pattern:$0x73625140]
    %v580 = vld.sshfl [vmem:[#allocation1 + $0x8] sm:$0xff pattern:$0x73625140]
    %583 = vrot.lane.b32.xlu0 %v579, 29
    %v584 = vpop.permute.xlu0 %583
    %585 = vrot.lane.b32.xlu0 %v580, 29
    %v586 = vpop.permute.xlu0 %585
    %vm587 = vcmp.lt.s32.totalorder %v106, 29
    %v588 = vsel %vm587, %v584, %v586
    %v589 = vsel %vm587, %v586, %v584
    %s590 = scalar_lea.vmem %s1, 21
    %v591 = vld [vmem:[%s590] ss:$8 sm:$0x3]
    %v593 = vperm.slane %v591, 0
    %v594 = vperm.slane %v591, 1
    %v597 = vmul.f32 %v593, %v589
    %v598 = vmul.f32 %v594, %v588
    %v599 = vadd.f32 %v562, %v597
    %v600 = vadd.f32 %v563, %v598
    %s601 = sld [smem:[#allocation2 + $0xe]]
    %s602 = sld [smem:[#allocation2 + $0x3f]]
    %v603 = vstv %s601
    %v604 = vmul.f32 %v603, %v40
    %v605 = vstv %s602
    %v606 = vmul.f32 %v605, %v80
    %v607 = vmul.f32 %v605, %v81
    %v610 = vrot.slane %v607, 6
    %v611 = vsel %vm31, %v606, %v610
    %v613 = vadd.f32 %v604, %v611
    %615 = vst [vmem:[#allocation1] ss:$4 sm:$0xff] %v613
    %v616 = vld.sshfl [vmem:[#allocation1] sm:$0xff pattern:$0x73625140]
    %v617 = vld.sshfl [vmem:[#allocation1 + $0x8] sm:$0xff pattern:$0x73625140]
    %620 = vrot.lane.b32.xlu0 %v616, 19
    %v621 = vpop.permute.xlu0 %620
    %622 = vrot.lane.b32.xlu0 %v617, 19
    %v623 = vpop.permute.xlu0 %622
    %vm624 = vcmp.lt.s32.totalorder %v106, 19
    %v625 = vsel %vm624, %v621, %v623
    %v626 = vsel %vm624, %v623, %v621
    %s627 = scalar_lea.vmem %s1, 22
    %v628 = vld [vmem:[%s627] ss:$8 sm:$0x3]
    %v630 = vperm.slane %v628, 0
    %v631 = vperm.slane %v628, 1
    %v634 = vmul.f32 %v630, %v626
    %v635 = vmul.f32 %v631, %v625
    %v636 = vadd.f32 %v599, %v634
    %v637 = vadd.f32 %v600, %v635
    %s638 = sld [smem:[#allocation2 + $0xf]]
    %s639 = sld [smem:[#allocation2 + $0x40]]
    %v640 = vstv %s638
    %v641 = vmul.f32 %v640, %v40
    %v642 = vstv %s639
    %v643 = vmul.f32 %v642, %v80
    %v644 = vmul.f32 %v642, %v81
    %v647 = vrot.slane %v644, 6
    %v648 = vsel %vm31, %v643, %v647
    %v650 = vadd.f32 %v641, %v648
    %652 = vst [vmem:[#allocation1] ss:$4 sm:$0xff] %v650
    %v653 = vld.sshfl [vmem:[#allocation1] sm:$0xff pattern:$0x73625140]
    %v654 = vld.sshfl [vmem:[#allocation1 + $0x8] sm:$0xff pattern:$0x73625140]
    %657 = vrot.lane.b32.xlu0 %v653, 18
    %v658 = vpop.permute.xlu0 %657
    %659 = vrot.lane.b32.xlu0 %v654, 18
    %v660 = vpop.permute.xlu0 %659
    %vm661 = vcmp.lt.s32.totalorder %v106, 18
    %v662 = vsel %vm661, %v658, %v660
    %v663 = vsel %vm661, %v660, %v658
    %s664 = scalar_lea.vmem %s1, 23
    %v665 = vld [vmem:[%s664] ss:$8 sm:$0x3]
    %v667 = vperm.slane %v665, 0
    %v668 = vperm.slane %v665, 1
    %v671 = vmul.f32 %v667, %v663
    %v672 = vmul.f32 %v668, %v662
    %v673 = vadd.f32 %v636, %v671
    %v674 = vadd.f32 %v637, %v672
    %s675 = sld [smem:[#allocation2 + $0x10]]
    %s676 = sld [smem:[#allocation2 + $0x41]]
    %v677 = vstv %s675
    %v678 = vmul.f32 %v677, %v40
    %v679 = vstv %s676
    %v680 = vmul.f32 %v679, %v80
    %v681 = vmul.f32 %v679, %v81
    %v684 = vrot.slane %v681, 6
    %v685 = vsel %vm31, %v680, %v684
    %v687 = vadd.f32 %v678, %v685
    %689 = vst [vmem:[#allocation1] ss:$4 sm:$0xff] %v687
    %v690 = vld.sshfl [vmem:[#allocation1] sm:$0xff pattern:$0x73625140]
    %v691 = vld.sshfl [vmem:[#allocation1 + $0x8] sm:$0xff pattern:$0x73625140]
    %694 = vrot.lane.b32.xlu0 %v690, 17
    %v695 = vpop.permute.xlu0 %694
    %696 = vrot.lane.b32.xlu0 %v691, 17
    %v697 = vpop.permute.xlu0 %696
    %vm698 = vcmp.lt.s32.totalorder %v106, 17
    %v699 = vsel %vm698, %v695, %v697
    %v700 = vsel %vm698, %v697, %v695
    %s701 = scalar_lea.vmem %s1, 32
    %v702 = vld [vmem:[%s701] ss:$8 sm:$0x3]
    %v704 = vperm.slane %v702, 0
    %v705 = vperm.slane %v702, 1
    %v708 = vmul.f32 %v704, %v700
    %v709 = vmul.f32 %v705, %v699
    %v710 = vadd.f32 %v673, %v708
    %v711 = vadd.f32 %v674, %v709
    %s712 = sld [smem:[#allocation2 + $0x11]]
    %s713 = sld [smem:[#allocation2 + $0x42]]
    %v714 = vstv %s712
    %v715 = vmul.f32 %v714, %v40
    %v716 = vstv %s713
    %v717 = vmul.f32 %v716, %v80
    %v718 = vmul.f32 %v716, %v81
    %v721 = vrot.slane %v718, 6
    %v722 = vsel %vm31, %v717, %v721
    %v724 = vadd.f32 %v715, %v722
    %726 = vst [vmem:[#allocation1] ss:$4 sm:$0xff] %v724
    %v727 = vld.sshfl [vmem:[#allocation1] sm:$0xff pattern:$0x73625140]
    %v728 = vld.sshfl [vmem:[#allocation1 + $0x8] sm:$0xff pattern:$0x73625140]
    %731 = vrot.lane.b32.xlu0 %v727, 16
    %v732 = vpop.permute.xlu0 %731
    %733 = vrot.lane.b32.xlu0 %v728, 16
    %v734 = vpop.permute.xlu0 %733
    %vm735 = vcmp.lt.s32.totalorder %v106, 16
    %v736 = vsel %vm735, %v732, %v734
    %v737 = vsel %vm735, %v734, %v732
    %s738 = scalar_lea.vmem %s1, 33
    %v739 = vld [vmem:[%s738] ss:$8 sm:$0x3]
    %v741 = vperm.slane %v739, 0
    %v742 = vperm.slane %v739, 1
    %v745 = vmul.f32 %v741, %v737
    %v746 = vmul.f32 %v742, %v736
    %v747 = vadd.f32 %v710, %v745
    %v748 = vadd.f32 %v711, %v746
    %s749 = sld [smem:[#allocation2 + $0x12]]
    %s750 = sld [smem:[#allocation2 + $0x43]]
    %v751 = vstv %s749
    %v752 = vmul.f32 %v751, %v40
    %v753 = vstv %s750
    %v754 = vmul.f32 %v753, %v80
    %v755 = vmul.f32 %v753, %v81
    %v758 = vrot.slane %v755, 6
    %v759 = vsel %vm31, %v754, %v758
    %v761 = vadd.f32 %v752, %v759
    %763 = vst [vmem:[#allocation1] ss:$4 sm:$0xff] %v761
    %v764 = vld.sshfl [vmem:[#allocation1] sm:$0xff pattern:$0x73625140]
    %v765 = vld.sshfl [vmem:[#allocation1 + $0x8] sm:$0xff pattern:$0x73625140]
    %768 = vrot.lane.b32.xlu0 %v764, 15
    %v769 = vpop.permute.xlu0 %768
    %770 = vrot.lane.b32.xlu0 %v765, 15
    %v771 = vpop.permute.xlu0 %770
    %vm772 = vcmp.lt.s32.totalorder %v106, 15
    %v773 = vsel %vm772, %v769, %v771
    %v774 = vsel %vm772, %v771, %v769
    %s775 = scalar_lea.vmem %s1, 34
    %v776 = vld [vmem:[%s775] ss:$8 sm:$0x3]
    %v778 = vperm.slane %v776, 0
    %v779 = vperm.slane %v776, 1
    %v782 = vmul.f32 %v778, %v774
    %v783 = vmul.f32 %v779, %v773
    %v784 = vadd.f32 %v747, %v782
    %v785 = vadd.f32 %v748, %v783
    %s786 = sld [smem:[#allocation2 + $0x13]]
    %s787 = sld [smem:[#allocation2 + $0x44]]
    %v788 = vstv %s786
    %v789 = vmul.f32 %v788, %v40
    %v790 = vstv %s787
    %v791 = vmul.f32 %v790, %v80
    %v792 = vmul.f32 %v790, %v81
    %v795 = vrot.slane %v792, 6
    %v796 = vsel %vm31, %v791, %v795
    %v798 = vadd.f32 %v789, %v796
    %800 = vst [vmem:[#allocation1] ss:$4 sm:$0xff] %v798
    %v801 = vld.sshfl [vmem:[#allocation1] sm:$0xff pattern:$0x73625140]
    %v802 = vld.sshfl [vmem:[#allocation1 + $0x8] sm:$0xff pattern:$0x73625140]
    %805 = vrot.lane.b32.xlu0 %v801, 14
    %v806 = vpop.permute.xlu0 %805
    %807 = vrot.lane.b32.xlu0 %v802, 14
    %v808 = vpop.permute.xlu0 %807
    %vm809 = vcmp.lt.s32.totalorder %v106, 14
    %v810 = vsel %vm809, %v806, %v808
    %v811 = vsel %vm809, %v808, %v806
    %s812 = scalar_lea.vmem %s1, 35
    %v813 = vld [vmem:[%s812] ss:$8 sm:$0x3]
    %v815 = vperm.slane %v813, 0
    %v816 = vperm.slane %v813, 1
    %v819 = vmul.f32 %v815, %v811
    %v820 = vmul.f32 %v816, %v810
    %v821 = vadd.f32 %v784, %v819
    %v822 = vadd.f32 %v785, %v820
    %s823 = sld [smem:[#allocation2 + $0x14]]
    %s824 = sld [smem:[#allocation2 + $0x45]]
    %v825 = vstv %s823
    %v826 = vmul.f32 %v825, %v40
    %v827 = vstv %s824
    %v828 = vmul.f32 %v827, %v80
    %v829 = vmul.f32 %v827, %v81
    %v832 = vrot.slane %v829, 6
    %v833 = vsel %vm31, %v828, %v832
    %v835 = vadd.f32 %v826, %v833
    %837 = vst [vmem:[#allocation1] ss:$4 sm:$0xff] %v835
    %v838 = vld.sshfl [vmem:[#allocation1] sm:$0xff pattern:$0x73625140]
    %v839 = vld.sshfl [vmem:[#allocation1 + $0x8] sm:$0xff pattern:$0x73625140]
    %842 = vrot.lane.b32.xlu0 %v838, 13
    %v843 = vpop.permute.xlu0 %842
    %844 = vrot.lane.b32.xlu0 %v839, 13
    %v845 = vpop.permute.xlu0 %844
    %vm846 = vcmp.lt.s32.totalorder %v106, 13
    %v847 = vsel %vm846, %v843, %v845
    %v848 = vsel %vm846, %v845, %v843
    %s849 = scalar_lea.vmem %s1, 36
    %v850 = vld [vmem:[%s849] ss:$8 sm:$0x3]
    %v852 = vperm.slane %v850, 0
    %v853 = vperm.slane %v850, 1
    %v856 = vmul.f32 %v852, %v848
    %v857 = vmul.f32 %v853, %v847
    %v858 = vadd.f32 %v821, %v856
    %v859 = vadd.f32 %v822, %v857
    %s860 = sld [smem:[#allocation2 + $0x15]]
    %s861 = sld [smem:[#allocation2 + $0x46]]
    %v862 = vstv %s860
    %v863 = vmul.f32 %v862, %v40
    %v864 = vstv %s861
    %v865 = vmul.f32 %v864, %v80
    %v866 = vmul.f32 %v864, %v81
    %v869 = vrot.slane %v866, 6
    %v870 = vsel %vm31, %v865, %v869
    %v872 = vadd.f32 %v863, %v870
    %874 = vst [vmem:[#allocation1] ss:$4 sm:$0xff] %v872
    %v875 = vld.sshfl [vmem:[#allocation1] sm:$0xff pattern:$0x73625140]
    %v876 = vld.sshfl [vmem:[#allocation1 + $0x8] sm:$0xff pattern:$0x73625140]
    %879 = vrot.lane.b32.xlu0 %v875, 3
    %v880 = vpop.permute.xlu0 %879
    %881 = vrot.lane.b32.xlu0 %v876, 3
    %v882 = vpop.permute.xlu0 %881
    %vm883 = vcmp.lt.s32.totalorder %v106, 3
    %v884 = vsel %vm883, %v880, %v882
    %v885 = vsel %vm883, %v882, %v880
    %s886 = scalar_lea.vmem %s1, 37
    %v887 = vld [vmem:[%s886] ss:$8 sm:$0x3]
    %v889 = vperm.slane %v887, 0
    %v890 = vperm.slane %v887, 1
    %v893 = vmul.f32 %v889, %v885
    %v894 = vmul.f32 %v890, %v884
    %v895 = vadd.f32 %v858, %v893
    %v896 = vadd.f32 %v859, %v894
    %s897 = sld [smem:[#allocation2 + $0x16]]
    %s898 = sld [smem:[#allocation2 + $0x47]]
    %v899 = vstv %s897
    %v900 = vmul.f32 %v899, %v40
    %v901 = vstv %s898
    %v902 = vmul.f32 %v901, %v80
    %v903 = vmul.f32 %v901, %v81
    %v906 = vrot.slane %v903, 6
    %v907 = vsel %vm31, %v902, %v906
    %v909 = vadd.f32 %v900, %v907
    %911 = vst [vmem:[#allocation1] ss:$4 sm:$0xff] %v909
    %v912 = vld.sshfl [vmem:[#allocation1] sm:$0xff pattern:$0x73625140]
    %v913 = vld.sshfl [vmem:[#allocation1 + $0x8] sm:$0xff pattern:$0x73625140]
    %916 = vrot.lane.b32.xlu0 %v912, 2
    %v917 = vpop.permute.xlu0 %916
    %918 = vrot.lane.b32.xlu0 %v913, 2
    %v919 = vpop.permute.xlu0 %918
    %vm920 = vcmp.lt.s32.totalorder %v106, 2
    %v921 = vsel %vm920, %v917, %v919
    %v922 = vsel %vm920, %v919, %v917
    %s923 = scalar_lea.vmem %s1, 38
    %v924 = vld [vmem:[%s923] ss:$8 sm:$0x3]
    %v926 = vperm.slane %v924, 0
    %v927 = vperm.slane %v924, 1
    %v930 = vmul.f32 %v926, %v922
    %v931 = vmul.f32 %v927, %v921
    %v932 = vadd.f32 %v895, %v930
    %v933 = vadd.f32 %v896, %v931
    %s934 = sld [smem:[#allocation2 + $0x17]]
    %s935 = sld [smem:[#allocation2 + $0x48]]
    %v936 = vstv %s934
    %v937 = vmul.f32 %v936, %v40
    %v938 = vstv %s935
    %v939 = vmul.f32 %v938, %v80
    %v940 = vmul.f32 %v938, %v81
    %v943 = vrot.slane %v940, 6
    %v944 = vsel %vm31, %v939, %v943
    %v946 = vadd.f32 %v937, %v944
    %948 = vst [vmem:[#allocation1] ss:$4 sm:$0xff] %v946
    %v949 = vld.sshfl [vmem:[#allocation1] sm:$0xff pattern:$0x73625140]
    %v950 = vld.sshfl [vmem:[#allocation1 + $0x8] sm:$0xff pattern:$0x73625140]
    %953 = vrot.lane.b32.xlu0 %v949, 1
    %v954 = vpop.permute.xlu0 %953
    %955 = vrot.lane.b32.xlu0 %v950, 1
    %v956 = vpop.permute.xlu0 %955
    %vm957 = vcmp.lt.s32.totalorder %v106, 1
    %v958 = vsel %vm957, %v954, %v956
    %v959 = vsel %vm957, %v956, %v954
    %s960 = scalar_lea.vmem %s1, 39
    %v961 = vld [vmem:[%s960] ss:$8 sm:$0x3]
    %v963 = vperm.slane %v961, 0
    %v964 = vperm.slane %v961, 1
    %v967 = vmul.f32 %v963, %v959
    %v968 = vmul.f32 %v964, %v958
    %v969 = vadd.f32 %v932, %v967
    %v970 = vadd.f32 %v933, %v968
    %s971 = sld [smem:[#allocation2 + $0x18]]
    %s972 = sld [smem:[#allocation2 + $0x49]]
    %v973 = vstv %s971
    %v974 = vmul.f32 %v973, %v40
    %v975 = vstv %s972
    %v976 = vmul.f32 %v975, %v80
    %v977 = vmul.f32 %v975, %v81
    %v980 = vrot.slane %v977, 6
    %v981 = vsel %vm31, %v976, %v980
    %v983 = vadd.f32 %v974, %v981
    %s984 = scalar_lea.vmem %s1, 48
    %v985 = vld [vmem:[%s984] ss:$8 sm:$0x3]
    %v987 = vperm.slane %v985, 0
    %v988 = vperm.slane %v985, 1
    %992 = vst [vmem:[#allocation1] ss:$4 sm:$0xff] %v983
    %v993 = vld.sshfl [vmem:[#allocation1] sm:$0xff pattern:$0x73625140]
    %v994 = vld.sshfl [vmem:[#allocation1 + $0x8] sm:$0xff pattern:$0x73625140]
    %v997 = vmul.f32 %v987, %v993
    %v998 = vmul.f32 %v988, %v994
    %v999 = vadd.f32 %v969, %v997
    %v1000 = vadd.f32 %v970, %v998
    %s1001 = sld [smem:[#allocation2 + $0x19]]
    %s1002 = sld [smem:[#allocation2 + $0x4a]]
    %v1003 = vstv %s1001
    %v1004 = vmul.f32 %v1003, %v40
    %v1005 = vstv %s1002
    %v1006 = vmul.f32 %v1005, %v80
    %v1007 = vmul.f32 %v1005, %v81
    %v1010 = vrot.slane %v1007, 6
    %v1011 = vsel %vm31, %v1006, %v1010
    %v1013 = vadd.f32 %v1004, %v1011
    %1015 = vst [vmem:[#allocation1] ss:$4 sm:$0xff] %v1013
    %v1016 = vld.sshfl [vmem:[#allocation1] sm:$0xff pattern:$0x73625140]
    %v1017 = vld.sshfl [vmem:[#allocation1 + $0x8] sm:$0xff pattern:$0x73625140]
    %1020 = vrot.lane.b32.xlu0 %v1016, 127
    %v1021 = vpop.permute.xlu0 %1020
    %1022 = vrot.lane.b32.xlu0 %v1017, 127
    %v1023 = vpop.permute.xlu0 %1022
    %vm1024 = vcmp.lt.s32.totalorder %v106, 127
    %v1025 = vsel %vm1024, %v1021, %v1023
    %v1026 = vsel %vm1024, %v1023, %v1021
    %s1027 = scalar_lea.vmem %s1, 49
    %v1028 = vld [vmem:[%s1027] ss:$8 sm:$0x3]
    %v1030 = vperm.slane %v1028, 0
    %v1031 = vperm.slane %v1028, 1
    %v1034 = vmul.f32 %v1030, %v1025
    %v1035 = vmul.f32 %v1031, %v1026
    %v1036 = vadd.f32 %v999, %v1034
    %v1037 = vadd.f32 %v1000, %v1035
    %s1038 = sld [smem:[#allocation2 + $0x1a]]
    %s1039 = sld [smem:[#allocation2 + $0x4b]]
    %v1040 = vstv %s1038
    %v1041 = vmul.f32 %v1040, %v40
    %v1042 = vstv %s1039
    %v1043 = vmul.f32 %v1042, %v80
    %v1044 = vmul.f32 %v1042, %v81
    %v1047 = vrot.slane %v1044, 6
    %v1048 = vsel %vm31, %v1043, %v1047
    %v1050 = vadd.f32 %v1041, %v1048
    %1052 = vst [vmem:[#allocation1] ss:$4 sm:$0xff] %v1050
    %v1053 = vld.sshfl [vmem:[#allocation1] sm:$0xff pattern:$0x73625140]
    %v1054 = vld.sshfl [vmem:[#allocation1 + $0x8] sm:$0xff pattern:$0x73625140]
    %1057 = vrot.lane.b32.xlu0 %v1053, 126
    %v1058 = vpop.permute.xlu0 %1057
    %1059 = vrot.lane.b32.xlu0 %v1054, 126
    %v1060 = vpop.permute.xlu0 %1059
    %vm1061 = vcmp.lt.s32.totalorder %v106, 126
    %v1062 = vsel %vm1061, %v1058, %v1060
    %v1063 = vsel %vm1061, %v1060, %v1058
    %s1064 = scalar_lea.vmem %s1, 50
    %v1065 = vld [vmem:[%s1064] ss:$8 sm:$0x3]
    %v1067 = vperm.slane %v1065, 0
    %v1068 = vperm.slane %v1065, 1
    %v1071 = vmul.f32 %v1067, %v1062
    %v1072 = vmul.f32 %v1068, %v1063
    %v1073 = vadd.f32 %v1036, %v1071
    %v1074 = vadd.f32 %v1037, %v1072
    %s1075 = sld [smem:[#allocation2 + $0x1b]]
    %s1076 = sld [smem:[#allocation2 + $0x4c]]
    %v1077 = vstv %s1075
    %v1078 = vmul.f32 %v1077, %v40
    %v1079 = vstv %s1076
    %v1080 = vmul.f32 %v1079, %v80
    %v1081 = vmul.f32 %v1079, %v81
    %v1084 = vrot.slane %v1081, 6
    %v1085 = vsel %vm31, %v1080, %v1084
    %v1087 = vadd.f32 %v1078, %v1085
    %1089 = vst [vmem:[#allocation1] ss:$4 sm:$0xff] %v1087
    %v1090 = vld.sshfl [vmem:[#allocation1] sm:$0xff pattern:$0x73625140]
    %v1091 = vld.sshfl [vmem:[#allocation1 + $0x8] sm:$0xff pattern:$0x73625140]
    %1094 = vrot.lane.b32.xlu0 %v1090, 125
    %v1095 = vpop.permute.xlu0 %1094
    %1096 = vrot.lane.b32.xlu0 %v1091, 125
    %v1097 = vpop.permute.xlu0 %1096
    %vm1098 = vcmp.lt.s32.totalorder %v106, 125
    %v1099 = vsel %vm1098, %v1095, %v1097
    %v1100 = vsel %vm1098, %v1097, %v1095
    %s1101 = scalar_lea.vmem %s1, 51
    %v1102 = vld [vmem:[%s1101] ss:$8 sm:$0x3]
    %v1104 = vperm.slane %v1102, 0
    %v1105 = vperm.slane %v1102, 1
    %v1108 = vmul.f32 %v1104, %v1099
    %v1109 = vmul.f32 %v1105, %v1100
    %v1110 = vadd.f32 %v1073, %v1108
    %v1111 = vadd.f32 %v1074, %v1109
    %s1112 = sld [smem:[#allocation2 + $0x1c]]
    %s1113 = sld [smem:[#allocation2 + $0x4d]]
    %v1114 = vstv %s1112
    %v1115 = vmul.f32 %v1114, %v40
    %v1116 = vstv %s1113
    %v1117 = vmul.f32 %v1116, %v80
    %v1118 = vmul.f32 %v1116, %v81
    %v1121 = vrot.slane %v1118, 6
    %v1122 = vsel %vm31, %v1117, %v1121
    %v1124 = vadd.f32 %v1115, %v1122
    %1126 = vst [vmem:[#allocation1] ss:$4 sm:$0xff] %v1124
    %v1127 = vld.sshfl [vmem:[#allocation1] sm:$0xff pattern:$0x73625140]
    %v1128 = vld.sshfl [vmem:[#allocation1 + $0x8] sm:$0xff pattern:$0x73625140]
    %1131 = vrot.lane.b32.xlu0 %v1127, 115
    %v1132 = vpop.permute.xlu0 %1131
    %1133 = vrot.lane.b32.xlu0 %v1128, 115
    %v1134 = vpop.permute.xlu0 %1133
    %vm1135 = vcmp.lt.s32.totalorder %v106, 115
    %v1136 = vsel %vm1135, %v1132, %v1134
    %v1137 = vsel %vm1135, %v1134, %v1132
    %s1138 = scalar_lea.vmem %s1, 52
    %v1139 = vld [vmem:[%s1138] ss:$8 sm:$0x3]
    %v1141 = vperm.slane %v1139, 0
    %v1142 = vperm.slane %v1139, 1
    %v1145 = vmul.f32 %v1141, %v1136
    %v1146 = vmul.f32 %v1142, %v1137
    %v1147 = vadd.f32 %v1110, %v1145
    %v1148 = vadd.f32 %v1111, %v1146
    %s1149 = sld [smem:[#allocation2 + $0x1d]]
    %s1150 = sld [smem:[#allocation2 + $0x4e]]
    %v1151 = vstv %s1149
    %v1152 = vmul.f32 %v1151, %v40
    %v1153 = vstv %s1150
    %v1154 = vmul.f32 %v1153, %v80
    %v1155 = vmul.f32 %v1153, %v81
    %v1158 = vrot.slane %v1155, 6
    %v1159 = vsel %vm31, %v1154, %v1158
    %v1161 = vadd.f32 %v1152, %v1159
    %1163 = vst [vmem:[#allocation1] ss:$4 sm:$0xff] %v1161
    %v1164 = vld.sshfl [vmem:[#allocation1] sm:$0xff pattern:$0x73625140]
    %v1165 = vld.sshfl [vmem:[#allocation1 + $0x8] sm:$0xff pattern:$0x73625140]
    %1168 = vrot.lane.b32.xlu0 %v1164, 114
    %v1169 = vpop.permute.xlu0 %1168
    %1170 = vrot.lane.b32.xlu0 %v1165, 114
    %v1171 = vpop.permute.xlu0 %1170
    %vm1172 = vcmp.lt.s32.totalorder %v106, 114
    %v1173 = vsel %vm1172, %v1169, %v1171
    %v1174 = vsel %vm1172, %v1171, %v1169
    %s1175 = scalar_lea.vmem %s1, 53
    %v1176 = vld [vmem:[%s1175] ss:$8 sm:$0x3]
    %v1178 = vperm.slane %v1176, 0
    %v1179 = vperm.slane %v1176, 1
    %v1182 = vmul.f32 %v1178, %v1173
    %v1183 = vmul.f32 %v1179, %v1174
    %v1184 = vadd.f32 %v1147, %v1182
    %v1185 = vadd.f32 %v1148, %v1183
    %s1186 = sld [smem:[#allocation2 + $0x1e]]
    %s1187 = sld [smem:[#allocation2 + $0x4f]]
    %v1188 = vstv %s1186
    %v1189 = vmul.f32 %v1188, %v40
    %v1190 = vstv %s1187
    %v1191 = vmul.f32 %v1190, %v80
    %v1192 = vmul.f32 %v1190, %v81
    %v1195 = vrot.slane %v1192, 6
    %v1196 = vsel %vm31, %v1191, %v1195
    %v1198 = vadd.f32 %v1189, %v1196
    %1200 = vst [vmem:[#allocation1] ss:$4 sm:$0xff] %v1198
    %v1201 = vld.sshfl [vmem:[#allocation1] sm:$0xff pattern:$0x73625140]
    %v1202 = vld.sshfl [vmem:[#allocation1 + $0x8] sm:$0xff pattern:$0x73625140]
    %1205 = vrot.lane.b32.xlu0 %v1201, 113
    %v1206 = vpop.permute.xlu0 %1205
    %1207 = vrot.lane.b32.xlu0 %v1202, 113
    %v1208 = vpop.permute.xlu0 %1207
    %vm1209 = vcmp.lt.s32.totalorder %v106, 113
    %v1210 = vsel %vm1209, %v1206, %v1208
    %v1211 = vsel %vm1209, %v1208, %v1206
    %s1212 = scalar_lea.vmem %s1, 54
    %v1213 = vld [vmem:[%s1212] ss:$8 sm:$0x3]
    %v1215 = vperm.slane %v1213, 0
    %v1216 = vperm.slane %v1213, 1
    %v1219 = vmul.f32 %v1215, %v1210
    %v1220 = vmul.f32 %v1216, %v1211
    %v1221 = vadd.f32 %v1184, %v1219
    %v1222 = vadd.f32 %v1185, %v1220
    %s1223 = sld [smem:[#allocation2 + $0x1f]]
    %s1224 = sld [smem:[#allocation2 + $0x50]]
    %v1225 = vstv %s1223
    %v1226 = vmul.f32 %v1225, %v40
    %v1227 = vstv %s1224
    %v1228 = vmul.f32 %v1227, %v80
    %v1229 = vmul.f32 %v1227, %v81
    %v1232 = vrot.slane %v1229, 6
    %v1233 = vsel %vm31, %v1228, %v1232
    %v1235 = vadd.f32 %v1226, %v1233
    %1237 = vst [vmem:[#allocation1] ss:$4 sm:$0xff] %v1235
    %v1238 = vld.sshfl [vmem:[#allocation1] sm:$0xff pattern:$0x73625140]
    %v1239 = vld.sshfl [vmem:[#allocation1 + $0x8] sm:$0xff pattern:$0x73625140]
    %1242 = vrot.lane.b32.xlu0 %v1238, 112
    %v1243 = vpop.permute.xlu0 %1242
    %1244 = vrot.lane.b32.xlu0 %v1239, 112
    %v1245 = vpop.permute.xlu0 %1244
    %vm1246 = vcmp.lt.s32.totalorder %v106, 112
    %v1247 = vsel %vm1246, %v1243, %v1245
    %v1248 = vsel %vm1246, %v1245, %v1243
    %s1249 = scalar_lea.vmem %s1, 55
    %v1250 = vld [vmem:[%s1249] ss:$8 sm:$0x3]
    %v1252 = vperm.slane %v1250, 0
    %v1253 = vperm.slane %v1250, 1
    %v1256 = vmul.f32 %v1252, %v1247
    %v1257 = vmul.f32 %v1253, %v1248
    %v1258 = vadd.f32 %v1221, %v1256
    %v1259 = vadd.f32 %v1222, %v1257
    %s1260 = sld [smem:[#allocation2 + $0x20]]
    %s1261 = sld [smem:[#allocation2 + $0x51]]
    %v1262 = vstv %s1260
    %v1263 = vmul.f32 %v1262, %v40
    %v1264 = vstv %s1261
    %v1265 = vmul.f32 %v1264, %v80
    %v1266 = vmul.f32 %v1264, %v81
    %v1269 = vrot.slane %v1266, 6
    %v1270 = vsel %vm31, %v1265, %v1269
    %v1272 = vadd.f32 %v1263, %v1270
    %1274 = vst [vmem:[#allocation1] ss:$4 sm:$0xff] %v1272
    %v1275 = vld.sshfl [vmem:[#allocation1] sm:$0xff pattern:$0x73625140]
    %v1276 = vld.sshfl [vmem:[#allocation1 + $0x8] sm:$0xff pattern:$0x73625140]
    %1279 = vrot.lane.b32.xlu0 %v1275, 111
    %v1280 = vpop.permute.xlu0 %1279
    %1281 = vrot.lane.b32.xlu0 %v1276, 111
    %v1282 = vpop.permute.xlu0 %1281
    %vm1283 = vcmp.lt.s32.totalorder %v106, 111
    %v1284 = vsel %vm1283, %v1280, %v1282
    %v1285 = vsel %vm1283, %v1282, %v1280
    %s1286 = scalar_lea.vmem %s1, 64
    %v1287 = vld [vmem:[%s1286] ss:$8 sm:$0x3]
    %v1289 = vperm.slane %v1287, 0
    %v1290 = vperm.slane %v1287, 1
    %v1293 = vmul.f32 %v1289, %v1284
    %v1294 = vmul.f32 %v1290, %v1285
    %v1295 = vadd.f32 %v1258, %v1293
    %v1296 = vadd.f32 %v1259, %v1294
    %s1297 = sld [smem:[#allocation2 + $0x21]]
    %s1298 = sld [smem:[#allocation2 + $0x52]]
    %v1299 = vstv %s1297
    %v1300 = vmul.f32 %v1299, %v40
    %v1301 = vstv %s1298
    %v1302 = vmul.f32 %v1301, %v80
    %v1303 = vmul.f32 %v1301, %v81
    %v1306 = vrot.slane %v1303, 6
    %v1307 = vsel %vm31, %v1302, %v1306
    %v1309 = vadd.f32 %v1300, %v1307
    %1311 = vst [vmem:[#allocation1] ss:$4 sm:$0xff] %v1309
    %v1312 = vld.sshfl [vmem:[#allocation1] sm:$0xff pattern:$0x73625140]
    %v1313 = vld.sshfl [vmem:[#allocation1 + $0x8] sm:$0xff pattern:$0x73625140]
    %1316 = vrot.lane.b32.xlu0 %v1312, 110
    %v1317 = vpop.permute.xlu0 %1316
    %1318 = vrot.lane.b32.xlu0 %v1313, 110
    %v1319 = vpop.permute.xlu0 %1318
    %vm1320 = vcmp.lt.s32.totalorder %v106, 110
    %v1321 = vsel %vm1320, %v1317, %v1319
    %v1322 = vsel %vm1320, %v1319, %v1317
    %s1323 = scalar_lea.vmem %s1, 65
    %v1324 = vld [vmem:[%s1323] ss:$8 sm:$0x3]
    %v1326 = vperm.slane %v1324, 0
    %v1327 = vperm.slane %v1324, 1
    %v1330 = vmul.f32 %v1326, %v1321
    %v1331 = vmul.f32 %v1327, %v1322
    %v1332 = vadd.f32 %v1295, %v1330
    %v1333 = vadd.f32 %v1296, %v1331
    %s1334 = sld [smem:[#allocation2 + $0x22]]
    %s1335 = sld [smem:[#allocation2 + $0x53]]
    %v1336 = vstv %s1334
    %v1337 = vmul.f32 %v1336, %v40
    %v1338 = vstv %s1335
    %v1339 = vmul.f32 %v1338, %v80
    %v1340 = vmul.f32 %v1338, %v81
    %v1343 = vrot.slane %v1340, 6
    %v1344 = vsel %vm31, %v1339, %v1343
    %v1346 = vadd.f32 %v1337, %v1344
    %1348 = vst [vmem:[#allocation1] ss:$4 sm:$0xff] %v1346
    %v1349 = vld.sshfl [vmem:[#allocation1] sm:$0xff pattern:$0x73625140]
    %v1350 = vld.sshfl [vmem:[#allocation1 + $0x8] sm:$0xff pattern:$0x73625140]
    %1353 = vrot.lane.b32.xlu0 %v1349, 109
    %v1354 = vpop.permute.xlu0 %1353
    %1355 = vrot.lane.b32.xlu0 %v1350, 109
    %v1356 = vpop.permute.xlu0 %1355
    %vm1357 = vcmp.lt.s32.totalorder %v106, 109
    %v1358 = vsel %vm1357, %v1354, %v1356
    %v1359 = vsel %vm1357, %v1356, %v1354
    %s1360 = scalar_lea.vmem %s1, 66
    %v1361 = vld [vmem:[%s1360] ss:$8 sm:$0x3]
    %v1363 = vperm.slane %v1361, 0
    %v1364 = vperm.slane %v1361, 1
    %v1367 = vmul.f32 %v1363, %v1358
    %v1368 = vmul.f32 %v1364, %v1359
    %v1369 = vadd.f32 %v1332, %v1367
    %v1370 = vadd.f32 %v1333, %v1368
    %s1371 = sld [smem:[#allocation2 + $0x23]]
    %s1372 = sld [smem:[#allocation2 + $0x54]]
    %v1373 = vstv %s1371
    %v1374 = vmul.f32 %v1373, %v40
    %v1375 = vstv %s1372
    %v1376 = vmul.f32 %v1375, %v80
    %v1377 = vmul.f32 %v1375, %v81
    %v1380 = vrot.slane %v1377, 6
    %v1381 = vsel %vm31, %v1376, %v1380
    %v1383 = vadd.f32 %v1374, %v1381
    %1385 = vst [vmem:[#allocation1] ss:$4 sm:$0xff] %v1383
    %v1386 = vld.sshfl [vmem:[#allocation1] sm:$0xff pattern:$0x73625140]
    %v1387 = vld.sshfl [vmem:[#allocation1 + $0x8] sm:$0xff pattern:$0x73625140]
    %1390 = vrot.lane.b32.xlu0 %v1386, 99
    %v1391 = vpop.permute.xlu0 %1390
    %1392 = vrot.lane.b32.xlu0 %v1387, 99
    %v1393 = vpop.permute.xlu0 %1392
    %vm1394 = vcmp.lt.s32.totalorder %v106, 99
    %v1395 = vsel %vm1394, %v1391, %v1393
    %v1396 = vsel %vm1394, %v1393, %v1391
    %s1397 = scalar_lea.vmem %s1, 67
    %v1398 = vld [vmem:[%s1397] ss:$8 sm:$0x3]
    %v1400 = vperm.slane %v1398, 0
    %v1401 = vperm.slane %v1398, 1
    %v1404 = vmul.f32 %v1400, %v1395
    %v1405 = vmul.f32 %v1401, %v1396
    %v1406 = vadd.f32 %v1369, %v1404
    %v1407 = vadd.f32 %v1370, %v1405
    %s1408 = sld [smem:[#allocation2 + $0x24]]
    %s1409 = sld [smem:[#allocation2 + $0x55]]
    %v1410 = vstv %s1408
    %v1411 = vmul.f32 %v1410, %v40
    %v1412 = vstv %s1409
    %v1413 = vmul.f32 %v1412, %v80
    %v1414 = vmul.f32 %v1412, %v81
    %v1417 = vrot.slane %v1414, 6
    %v1418 = vsel %vm31, %v1413, %v1417
    %v1420 = vadd.f32 %v1411, %v1418
    %1422 = vst [vmem:[#allocation1] ss:$4 sm:$0xff] %v1420
    %v1423 = vld.sshfl [vmem:[#allocation1] sm:$0xff pattern:$0x73625140]
    %v1424 = vld.sshfl [vmem:[#allocation1 + $0x8] sm:$0xff pattern:$0x73625140]
    %1427 = vrot.lane.b32.xlu0 %v1423, 98
    %v1428 = vpop.permute.xlu0 %1427
    %1429 = vrot.lane.b32.xlu0 %v1424, 98
    %v1430 = vpop.permute.xlu0 %1429
    %vm1431 = vcmp.lt.s32.totalorder %v106, 98
    %v1432 = vsel %vm1431, %v1428, %v1430
    %v1433 = vsel %vm1431, %v1430, %v1428
    %s1434 = scalar_lea.vmem %s1, 68
    %v1435 = vld [vmem:[%s1434] ss:$8 sm:$0x3]
    %v1437 = vperm.slane %v1435, 0
    %v1438 = vperm.slane %v1435, 1
    %v1441 = vmul.f32 %v1437, %v1432
    %v1442 = vmul.f32 %v1438, %v1433
    %v1443 = vadd.f32 %v1406, %v1441
    %v1444 = vadd.f32 %v1407, %v1442
    %s1445 = sld [smem:[#allocation2 + $0x25]]
    %s1446 = sld [smem:[#allocation2 + $0x56]]
    %v1447 = vstv %s1445
    %v1448 = vmul.f32 %v1447, %v40
    %v1449 = vstv %s1446
    %v1450 = vmul.f32 %v1449, %v80
    %v1451 = vmul.f32 %v1449, %v81
    %v1454 = vrot.slane %v1451, 6
    %v1455 = vsel %vm31, %v1450, %v1454
    %v1457 = vadd.f32 %v1448, %v1455
    %1459 = vst [vmem:[#allocation1] ss:$4 sm:$0xff] %v1457
    %v1460 = vld.sshfl [vmem:[#allocation1] sm:$0xff pattern:$0x73625140]
    %v1461 = vld.sshfl [vmem:[#allocation1 + $0x8] sm:$0xff pattern:$0x73625140]
    %1464 = vrot.lane.b32.xlu0 %v1460, 97
    %v1465 = vpop.permute.xlu0 %1464
    %1466 = vrot.lane.b32.xlu0 %v1461, 97
    %v1467 = vpop.permute.xlu0 %1466
    %vm1468 = vcmp.lt.s32.totalorder %v106, 97
    %v1469 = vsel %vm1468, %v1465, %v1467
    %v1470 = vsel %vm1468, %v1467, %v1465
    %s1471 = scalar_lea.vmem %s1, 69
    %v1472 = vld [vmem:[%s1471] ss:$8 sm:$0x3]
    %v1474 = vperm.slane %v1472, 0
    %v1475 = vperm.slane %v1472, 1
    %v1478 = vmul.f32 %v1474, %v1469
    %v1479 = vmul.f32 %v1475, %v1470
    %v1480 = vadd.f32 %v1443, %v1478
    %v1481 = vadd.f32 %v1444, %v1479
    %s1482 = sld [smem:[#allocation2 + $0x26]]
    %s1483 = sld [smem:[#allocation2 + $0x57]]
    %v1484 = vstv %s1482
    %v1485 = vmul.f32 %v1484, %v40
    %v1486 = vstv %s1483
    %v1487 = vmul.f32 %v1486, %v80
    %v1488 = vmul.f32 %v1486, %v81
    %v1491 = vrot.slane %v1488, 6
    %v1492 = vsel %vm31, %v1487, %v1491
    %v1494 = vadd.f32 %v1485, %v1492
    %1496 = vst [vmem:[#allocation1] ss:$4 sm:$0xff] %v1494
    %v1497 = vld.sshfl [vmem:[#allocation1] sm:$0xff pattern:$0x73625140]
    %v1498 = vld.sshfl [vmem:[#allocation1 + $0x8] sm:$0xff pattern:$0x73625140]
    %1501 = vrot.lane.b32.xlu0 %v1497, 96
    %v1502 = vpop.permute.xlu0 %1501
    %1503 = vrot.lane.b32.xlu0 %v1498, 96
    %v1504 = vpop.permute.xlu0 %1503
    %vm1505 = vcmp.lt.s32.totalorder %v106, 96
    %v1506 = vsel %vm1505, %v1502, %v1504
    %v1507 = vsel %vm1505, %v1504, %v1502
    %s1508 = scalar_lea.vmem %s1, 70
    %v1509 = vld [vmem:[%s1508] ss:$8 sm:$0x3]
    %v1511 = vperm.slane %v1509, 0
    %v1512 = vperm.slane %v1509, 1
    %v1515 = vmul.f32 %v1511, %v1506
    %v1516 = vmul.f32 %v1512, %v1507
    %v1517 = vadd.f32 %v1480, %v1515
    %v1518 = vadd.f32 %v1481, %v1516
    %s1519 = sld [smem:[#allocation2 + $0x27]]
    %s1520 = sld [smem:[#allocation2 + $0x58]]
    %v1521 = vstv %s1519
    %v1522 = vmul.f32 %v1521, %v40
    %v1523 = vstv %s1520
    %v1524 = vmul.f32 %v1523, %v80
    %v1525 = vmul.f32 %v1523, %v81
    %v1528 = vrot.slane %v1525, 6
    %v1529 = vsel %vm31, %v1524, %v1528
    %v1531 = vadd.f32 %v1522, %v1529
    %1533 = vst [vmem:[#allocation1] ss:$4 sm:$0xff] %v1531
    %v1534 = vld.sshfl [vmem:[#allocation1] sm:$0xff pattern:$0x73625140]
    %v1535 = vld.sshfl [vmem:[#allocation1 + $0x8] sm:$0xff pattern:$0x73625140]
    %1538 = vrot.lane.b32.xlu0 %v1534, 95
    %v1539 = vpop.permute.xlu0 %1538
    %1540 = vrot.lane.b32.xlu0 %v1535, 95
    %v1541 = vpop.permute.xlu0 %1540
    %vm1542 = vcmp.lt.s32.totalorder %v106, 95
    %v1543 = vsel %vm1542, %v1539, %v1541
    %v1544 = vsel %vm1542, %v1541, %v1539
    %s1545 = scalar_lea.vmem %s1, 71
    %v1546 = vld [vmem:[%s1545] ss:$8 sm:$0x3]
    %v1548 = vperm.slane %v1546, 0
    %v1549 = vperm.slane %v1546, 1
    %v1552 = vmul.f32 %v1548, %v1543
    %v1553 = vmul.f32 %v1549, %v1544
    %v1554 = vadd.f32 %v1517, %v1552
    %v1555 = vadd.f32 %v1518, %v1553
    %s1556 = sld [smem:[#allocation2 + $0x28]]
    %s1557 = sld [smem:[#allocation2 + $0x59]]
    %v1558 = vstv %s1556
    %v1559 = vmul.f32 %v1558, %v40
    %v1560 = vstv %s1557
    %v1561 = vmul.f32 %v1560, %v80
    %v1562 = vmul.f32 %v1560, %v81
    %v1565 = vrot.slane %v1562, 6
    %v1566 = vsel %vm31, %v1561, %v1565
    %v1568 = vadd.f32 %v1559, %v1566
    %1570 = vst [vmem:[#allocation1] ss:$4 sm:$0xff] %v1568
    %v1571 = vld.sshfl [vmem:[#allocation1] sm:$0xff pattern:$0x73625140]
    %v1572 = vld.sshfl [vmem:[#allocation1 + $0x8] sm:$0xff pattern:$0x73625140]
    %1575 = vrot.lane.b32.xlu0 %v1571, 94
    %v1576 = vpop.permute.xlu0 %1575
    %1577 = vrot.lane.b32.xlu0 %v1572, 94
    %v1578 = vpop.permute.xlu0 %1577
    %vm1579 = vcmp.lt.s32.totalorder %v106, 94
    %v1580 = vsel %vm1579, %v1576, %v1578
    %v1581 = vsel %vm1579, %v1578, %v1576
    %s1582 = scalar_lea.vmem %s1, 80
    %v1583 = vld [vmem:[%s1582] ss:$8 sm:$0x3]
    %v1585 = vperm.slane %v1583, 0
    %v1586 = vperm.slane %v1583, 1
    %v1589 = vmul.f32 %v1585, %v1580
    %v1590 = vmul.f32 %v1586, %v1581
    %v1591 = vadd.f32 %v1554, %v1589
    %v1592 = vadd.f32 %v1555, %v1590
    %s1593 = sld [smem:[#allocation2 + $0x29]]
    %s1594 = sld [smem:[#allocation2 + $0x5a]]
    %v1595 = vstv %s1593
    %v1596 = vmul.f32 %v1595, %v40
    %v1597 = vstv %s1594
    %v1598 = vmul.f32 %v1597, %v80
    %v1599 = vmul.f32 %v1597, %v81
    %v1602 = vrot.slane %v1599, 6
    %v1603 = vsel %vm31, %v1598, %v1602
    %v1605 = vadd.f32 %v1596, %v1603
    %1607 = vst [vmem:[#allocation1] ss:$4 sm:$0xff] %v1605
    %v1608 = vld.sshfl [vmem:[#allocation1] sm:$0xff pattern:$0x73625140]
    %v1609 = vld.sshfl [vmem:[#allocation1 + $0x8] sm:$0xff pattern:$0x73625140]
    %1612 = vrot.lane.b32.xlu0 %v1608, 93
    %v1613 = vpop.permute.xlu0 %1612
    %1614 = vrot.lane.b32.xlu0 %v1609, 93
    %v1615 = vpop.permute.xlu0 %1614
    %vm1616 = vcmp.lt.s32.totalorder %v106, 93
    %v1617 = vsel %vm1616, %v1613, %v1615
    %v1618 = vsel %vm1616, %v1615, %v1613
    %s1619 = scalar_lea.vmem %s1, 81
    %v1620 = vld [vmem:[%s1619] ss:$8 sm:$0x3]
    %v1622 = vperm.slane %v1620, 0
    %v1623 = vperm.slane %v1620, 1
    %v1626 = vmul.f32 %v1622, %v1617
    %v1627 = vmul.f32 %v1623, %v1618
    %v1628 = vadd.f32 %v1591, %v1626
    %v1629 = vadd.f32 %v1592, %v1627
    %s1630 = sld [smem:[#allocation2 + $0x2a]]
    %s1631 = sld [smem:[#allocation2 + $0x5b]]
    %v1632 = vstv %s1630
    %v1633 = vmul.f32 %v1632, %v40
    %v1634 = vstv %s1631
    %v1635 = vmul.f32 %v1634, %v80
    %v1636 = vmul.f32 %v1634, %v81
    %v1639 = vrot.slane %v1636, 6
    %v1640 = vsel %vm31, %v1635, %v1639
    %v1642 = vadd.f32 %v1633, %v1640
    %1644 = vst [vmem:[#allocation1] ss:$4 sm:$0xff] %v1642
    %v1645 = vld.sshfl [vmem:[#allocation1] sm:$0xff pattern:$0x73625140]
    %v1646 = vld.sshfl [vmem:[#allocation1 + $0x8] sm:$0xff pattern:$0x73625140]
    %1649 = vrot.lane.b32.xlu0 %v1645, 83
    %v1650 = vpop.permute.xlu0 %1649
    %1651 = vrot.lane.b32.xlu0 %v1646, 83
    %v1652 = vpop.permute.xlu0 %1651
    %vm1653 = vcmp.lt.s32.totalorder %v106, 83
    %v1654 = vsel %vm1653, %v1650, %v1652
    %v1655 = vsel %vm1653, %v1652, %v1650
    %s1656 = scalar_lea.vmem %s1, 82
    %v1657 = vld [vmem:[%s1656] ss:$8 sm:$0x3]
    %v1659 = vperm.slane %v1657, 0
    %v1660 = vperm.slane %v1657, 1
    %v1663 = vmul.f32 %v1659, %v1654
    %v1664 = vmul.f32 %v1660, %v1655
    %v1665 = vadd.f32 %v1628, %v1663
    %v1666 = vadd.f32 %v1629, %v1664
    %s1667 = sld [smem:[#allocation2 + $0x2b]]
    %s1668 = sld [smem:[#allocation2 + $0x5c]]
    %v1669 = vstv %s1667
    %v1670 = vmul.f32 %v1669, %v40
    %v1671 = vstv %s1668
    %v1672 = vmul.f32 %v1671, %v80
    %v1673 = vmul.f32 %v1671, %v81
    %v1676 = vrot.slane %v1673, 6
    %v1677 = vsel %vm31, %v1672, %v1676
    %v1679 = vadd.f32 %v1670, %v1677
    %1681 = vst [vmem:[#allocation1] ss:$4 sm:$0xff] %v1679
    %v1682 = vld.sshfl [vmem:[#allocation1] sm:$0xff pattern:$0x73625140]
    %v1683 = vld.sshfl [vmem:[#allocation1 + $0x8] sm:$0xff pattern:$0x73625140]
    %1686 = vrot.lane.b32.xlu0 %v1682, 82
    %v1687 = vpop.permute.xlu0 %1686
    %1688 = vrot.lane.b32.xlu0 %v1683, 82
    %v1689 = vpop.permute.xlu0 %1688
    %vm1690 = vcmp.lt.s32.totalorder %v106, 82
    %v1691 = vsel %vm1690, %v1687, %v1689
    %v1692 = vsel %vm1690, %v1689, %v1687
    %s1693 = scalar_lea.vmem %s1, 83
    %v1694 = vld [vmem:[%s1693] ss:$8 sm:$0x3]
    %v1696 = vperm.slane %v1694, 0
    %v1697 = vperm.slane %v1694, 1
    %v1700 = vmul.f32 %v1696, %v1691
    %v1701 = vmul.f32 %v1697, %v1692
    %v1702 = vadd.f32 %v1665, %v1700
    %v1703 = vadd.f32 %v1666, %v1701
    %s1704 = sld [smem:[#allocation2 + $0x2c]]
    %s1705 = sld [smem:[#allocation2 + $0x5d]]
    %v1706 = vstv %s1704
    %v1707 = vmul.f32 %v1706, %v40
    %v1708 = vstv %s1705
    %v1709 = vmul.f32 %v1708, %v80
    %v1710 = vmul.f32 %v1708, %v81
    %v1713 = vrot.slane %v1710, 6
    %v1714 = vsel %vm31, %v1709, %v1713
    %v1716 = vadd.f32 %v1707, %v1714
    %1718 = vst [vmem:[#allocation1] ss:$4 sm:$0xff] %v1716
    %v1719 = vld.sshfl [vmem:[#allocation1] sm:$0xff pattern:$0x73625140]
    %v1720 = vld.sshfl [vmem:[#allocation1 + $0x8] sm:$0xff pattern:$0x73625140]
    %1723 = vrot.lane.b32.xlu0 %v1719, 81
    %v1724 = vpop.permute.xlu0 %1723
    %1725 = vrot.lane.b32.xlu0 %v1720, 81
    %v1726 = vpop.permute.xlu0 %1725
    %vm1727 = vcmp.lt.s32.totalorder %v106, 81
    %v1728 = vsel %vm1727, %v1724, %v1726
    %v1729 = vsel %vm1727, %v1726, %v1724
    %s1730 = scalar_lea.vmem %s1, 84
    %v1731 = vld [vmem:[%s1730] ss:$8 sm:$0x3]
    %v1733 = vperm.slane %v1731, 0
    %v1734 = vperm.slane %v1731, 1
    %v1737 = vmul.f32 %v1733, %v1728
    %v1738 = vmul.f32 %v1734, %v1729
    %v1739 = vadd.f32 %v1702, %v1737
    %v1740 = vadd.f32 %v1703, %v1738
    %s1741 = sld [smem:[#allocation2 + $0x2d]]
    %s1742 = sld [smem:[#allocation2 + $0x5e]]
    %v1743 = vstv %s1741
    %v1744 = vmul.f32 %v1743, %v40
    %v1745 = vstv %s1742
    %v1746 = vmul.f32 %v1745, %v80
    %v1747 = vmul.f32 %v1745, %v81
    %v1750 = vrot.slane %v1747, 6
    %v1751 = vsel %vm31, %v1746, %v1750
    %v1753 = vadd.f32 %v1744, %v1751
    %1755 = vst [vmem:[#allocation1] ss:$4 sm:$0xff] %v1753
    %v1756 = vld.sshfl [vmem:[#allocation1] sm:$0xff pattern:$0x73625140]
    %v1757 = vld.sshfl [vmem:[#allocation1 + $0x8] sm:$0xff pattern:$0x73625140]
    %1760 = vrot.lane.b32.xlu0 %v1756, 80
    %v1761 = vpop.permute.xlu0 %1760
    %1762 = vrot.lane.b32.xlu0 %v1757, 80
    %v1763 = vpop.permute.xlu0 %1762
    %vm1764 = vcmp.lt.s32.totalorder %v106, 80
    %v1765 = vsel %vm1764, %v1761, %v1763
    %v1766 = vsel %vm1764, %v1763, %v1761
    %s1767 = scalar_lea.vmem %s1, 85
    %v1768 = vld [vmem:[%s1767] ss:$8 sm:$0x3]
    %v1770 = vperm.slane %v1768, 0
    %v1771 = vperm.slane %v1768, 1
    %v1774 = vmul.f32 %v1770, %v1765
    %v1775 = vmul.f32 %v1771, %v1766
    %v1776 = vadd.f32 %v1739, %v1774
    %v1777 = vadd.f32 %v1740, %v1775
    %s1778 = sld [smem:[#allocation2 + $0x2e]]
    %s1779 = sld [smem:[#allocation2 + $0x5f]]
    %v1780 = vstv %s1778
    %v1781 = vmul.f32 %v1780, %v40
    %v1782 = vstv %s1779
    %v1783 = vmul.f32 %v1782, %v80
    %v1784 = vmul.f32 %v1782, %v81
    %v1787 = vrot.slane %v1784, 6
    %v1788 = vsel %vm31, %v1783, %v1787
    %v1790 = vadd.f32 %v1781, %v1788
    %1792 = vst [vmem:[#allocation1] ss:$4 sm:$0xff] %v1790
    %v1793 = vld.sshfl [vmem:[#allocation1] sm:$0xff pattern:$0x73625140]
    %v1794 = vld.sshfl [vmem:[#allocation1 + $0x8] sm:$0xff pattern:$0x73625140]
    %1797 = vrot.lane.b32.xlu0 %v1793, 79
    %v1798 = vpop.permute.xlu0 %1797
    %1799 = vrot.lane.b32.xlu0 %v1794, 79
    %v1800 = vpop.permute.xlu0 %1799
    %vm1801 = vcmp.lt.s32.totalorder %v106, 79
    %v1802 = vsel %vm1801, %v1798, %v1800
    %v1803 = vsel %vm1801, %v1800, %v1798
    %s1804 = scalar_lea.vmem %s1, 86
    %v1805 = vld [vmem:[%s1804] ss:$8 sm:$0x3]
    %v1807 = vperm.slane %v1805, 0
    %v1808 = vperm.slane %v1805, 1
    %v1811 = vmul.f32 %v1807, %v1802
    %v1812 = vmul.f32 %v1808, %v1803
    %v1813 = vadd.f32 %v1776, %v1811
    %v1814 = vadd.f32 %v1777, %v1812
    %s1815 = sld [smem:[#allocation2 + $0x2f]]
    %s1816 = sld [smem:[#allocation2 + $0x60]]
    %v1817 = vstv %s1815
    %v1818 = vmul.f32 %v1817, %v40
    %v1819 = vstv %s1816
    %v1820 = vmul.f32 %v1819, %v80
    %v1821 = vmul.f32 %v1819, %v81
    %v1824 = vrot.slane %v1821, 6
    %v1825 = vsel %vm31, %v1820, %v1824
    %v1827 = vadd.f32 %v1818, %v1825
    %1829 = vst [vmem:[#allocation1] ss:$4 sm:$0xff] %v1827
    %v1830 = vld.sshfl [vmem:[#allocation1] sm:$0xff pattern:$0x73625140]
    %v1831 = vld.sshfl [vmem:[#allocation1 + $0x8] sm:$0xff pattern:$0x73625140]
    %1834 = vrot.lane.b32.xlu0 %v1830, 78
    %v1835 = vpop.permute.xlu0 %1834
    %1836 = vrot.lane.b32.xlu0 %v1831, 78
    %v1837 = vpop.permute.xlu0 %1836
    %vm1838 = vcmp.lt.s32.totalorder %v106, 78
    %v1839 = vsel %vm1838, %v1835, %v1837
    %v1840 = vsel %vm1838, %v1837, %v1835
    %s1841 = scalar_lea.vmem %s1, 87
    %v1842 = vld [vmem:[%s1841] ss:$8 sm:$0x3]
    %v1844 = vperm.slane %v1842, 0
    %v1845 = vperm.slane %v1842, 1
    %v1848 = vmul.f32 %v1844, %v1839
    %v1849 = vmul.f32 %v1845, %v1840
    %v1850 = vadd.f32 %v1813, %v1848
    %v1851 = vadd.f32 %v1814, %v1849
    %s1852 = sld [smem:[#allocation2 + $0x30]]
    %s1853 = sld [smem:[#allocation2 + $0x61]]
    %v1854 = vstv %s1852
    %v1855 = vmul.f32 %v1854, %v40
    %v1856 = vstv %s1853
    %v1857 = vmul.f32 %v1856, %v80
    %v1858 = vmul.f32 %v1856, %v81
    %v1861 = vrot.slane %v1858, 6
    %v1862 = vsel %vm31, %v1857, %v1861
    %v1864 = vadd.f32 %v1855, %v1862
    %1866 = vst [vmem:[#allocation1] ss:$4 sm:$0xff] %v1864
    %v1867 = vld.sshfl [vmem:[#allocation1] sm:$0xff pattern:$0x73625140]
    %v1868 = vld.sshfl [vmem:[#allocation1 + $0x8] sm:$0xff pattern:$0x73625140]
    %1871 = vrot.lane.b32.xlu0 %v1867, 77
    %v1872 = vpop.permute.xlu0 %1871
    %1873 = vrot.lane.b32.xlu0 %v1868, 77
    %v1874 = vpop.permute.xlu0 %1873
    %vm1875 = vcmp.lt.s32.totalorder %v106, 77
    %v1876 = vsel %vm1875, %v1872, %v1874
    %v1877 = vsel %vm1875, %v1874, %v1872
    %s1878 = scalar_lea.vmem %s1, 96
    %v1879 = vld [vmem:[%s1878] ss:$8 sm:$0x3]
    %v1881 = vperm.slane %v1879, 0
    %v1882 = vperm.slane %v1879, 1
    %v1885 = vmul.f32 %v1881, %v1876
    %v1886 = vmul.f32 %v1882, %v1877
    %v1887 = vadd.f32 %v1850, %v1885
    %v1888 = vadd.f32 %v1851, %v1886
    %v1889 = vxor.u32 %v1887, 2147483648
    %v1890 = vxor.u32 %v1888, 2147483648
    %v1891 = vmul.f32 %v1889, 1.442695
    %v1892 = vpow.pop %v1891
    %v1893 = vmul.f32 %v1890, 1.442695
    %v1894 = vpow.pop %v1893
    %v1895 = vadd.f32 %v1892, 1.0
    %v1896 = vadd.f32 %v1894, 1.0
    %v1897 = vrcp.pop %v1895
    %v1898 = vmul.f32 %v1895, %v1897
    %v1899 = vsub.f32 1.0, %v1898
    %v1900 = vmul.f32 %v1897, %v1899
    %v1901 = vadd.f32 %v1897, %v1900
    %vm1902 = vweird.f32 %v1895
    %vm1903 = vweird.f32 %v1897
    %vm1904 = vmor %vm1902, %vm1903
    %v1905 = vsel %vm1904, %v1897, %v1901
    %v1906 = vand.u32 2147483647, %v1895
    %vm1907 = vcmp.eq.f32.partialorder %v1906, 8.507059e+37
    %v1908 = vand.u32 %v1895, 2147483648
    %v1909 = vor.u32 1.1754944e-38, %v1908
    %v1910 = vsel %vm1907, %v1909, %v1905
    %v1911 = vmul.f32 1.0, %v1910
    %v1912 = vrcp.pop %v1896
    %v1913 = vmul.f32 %v1896, %v1912
    %v1914 = vsub.f32 1.0, %v1913
    %v1915 = vmul.f32 %v1912, %v1914
    %v1916 = vadd.f32 %v1912, %v1915
    %vm1917 = vweird.f32 %v1896
    %vm1918 = vweird.f32 %v1912
    %vm1919 = vmor %vm1917, %vm1918
    %v1920 = vsel %vm1919, %v1912, %v1916
    %v1921 = vand.u32 2147483647, %v1896
    %vm1922 = vcmp.eq.f32.partialorder %v1921, 8.507059e+37
    %v1923 = vand.u32 %v1896, 2147483648
    %v1924 = vor.u32 1.1754944e-38, %v1923
    %v1925 = vsel %vm1922, %v1924, %v1920
    %v1926 = vmul.f32 1.0, %v1925
    %v1929 = vrot.slane %v1926, 6
    %v1930 = vsel %vm31, %v1911, %v1929
    %1932 = vst [vmem:[%s3] sm:$0xf] %v1930
    // Predicated region
    $region18: #{channel_spatial_attention.1} parent=1 // pred_check
      _
    $region19: #{channel_spatial_attention.1} parent=1 // pred_check_branch
      %1934 = sbr.rel (0) target = $region21
    $region20: #{channel_spatial_attention.1} parent=1 // pred_region
      _
    $region21: #{channel_spatial_attention.1} parent=1 // pred_fallthru
      _
    // Predicated region
    $region22: #{channel_spatial_attention.1} parent=1 // pred_check
      _
    $region23: #{channel_spatial_attention.1} parent=1 // pred_check_branch
      %1936 = sbr.rel (0) target = $region25
    $region24: #{channel_spatial_attention.1} parent=1 // pred_region
      _
    $region25: #{channel_spatial_attention.1} parent=1 // pred_fallthru
      _
    %1937 = vsyncpa [#allocation3], 1

</llo_original>
